<compile_context>
chip_gen: v7x
topology: tpu7x:2x2x1
jax: 0.10.0
libtpu: 0.0.40
codegen_flags: <defaults>
</compile_context>

<pallas_src>
import numpy as np
from math import e, pi

import jax
import jax.numpy as jnp
from jax.experimental import pallas as pl
from jax.experimental.pallas import tpu as pltpu


# ---------------------------------------------------------------------------
# Deterministic parameter construction (mirrors the PyTorch __init__ helpers).
# ---------------------------------------------------------------------------
def kernel_weights_dif(t_conv_kernel):
    if t_conv_kernel == 2:
        tw = [-1.0, 1.0]
    elif t_conv_kernel == 3:
        tw = [-0.5, 1.0, -0.5]
    elif t_conv_kernel == 4:
        tw = [0.25, -0.75, 0.75, -0.25]
    elif t_conv_kernel == 5:
        tw = [-0.125, 0.5, -0.75, 0.5, -0.125]
    else:
        raise ValueError(f"undefined time conv1d size: {t_conv_kernel}")
    return np.asarray(tw, dtype=np.float32)


def kernel_weights_gaussian(l, sigma):
    # NOTE: operator precedence intentionally mirrors the PyTorch source.
    fw = np.zeros((l, l), dtype=np.float32)
    for x in range(l // 2 + 1):
        for y in range(l // 2 + 1):
            d2 = (x * x + y * y) / 2 * sigma
            A = 1 - d2 / 2 * sigma ** 2
            B = e ** (-d2) / (pi * sigma ** 4)
            v = np.float32(B * A)
            fw[l // 2 - x, l // 2 - y] = v
            fw[l // 2 - x, l // 2 + y] = v
            fw[l // 2 + x, l // 2 - y] = v
            fw[l // 2 + x, l // 2 + y] = v
    fw = fw * np.float32(1.0 / fw.sum())
    return fw


# ---------------------------------------------------------------------------
# Hardware query (generation-aware block sizing)
# ---------------------------------------------------------------------------
def _tpu_vmem_and_cores():
    kind = ""
    try:
        kind = jax.devices()[0].device_kind.lower()
    except Exception:
        pass
    vmem = None
    try:
        vmem = int(getattr(pltpu.get_tpu_info(), "vmem_capacity_bytes", 0))
    except Exception:
        vmem = None
    if not vmem or vmem <= 0:
        vmem = (64 << 20) if "v7" in kind else (128 << 20)
    # Chips with 2 TensorCores sharing a "parallel" grid axis (megacore).
    two_tc = any(tag in kind for tag in ("v7", "v4", "v5p"))
    return vmem, two_tc


# ---------------------------------------------------------------------------
# Pallas kernel
# ---------------------------------------------------------------------------
def make_mdfm_kernel(BB, T, C, TP, H, GWtot, tw, fw, sharpen_cycles, norm_add):
    TK = int(tw.shape[0])                  # temporal conv kernel size
    KH = int(fw.shape[0])                  # spatial Gaussian kernel size
    ph = KH // 2                           # 'same' halo
    HP = H + 2 * ph
    coef = [float(v) / 3.0 for v in tw]    # grey weight (1/3) folded in
    norm_add = float(norm_add)

    # Group Gaussian taps by shared weight (symmetry: 3 distinct weights for
    # 3x3, 6 for 5x5).  Sum taps per group first, then one multiply per group.
    wgroups = {}
    for dy in range(KH):
        for dx in range(KH):
            wgroups.setdefault(float(fw[dy, dx]), []).append((dy, dx))
    group_items = list(wgroups.items())    # [(weight, [(dy,dx), ...]), ...]

    def kernel(mask_ref, x_ref, out_ref, *scratch):
        # x_ref   : (BB, T, C, H, GWtot) lane-packed canvas (zero halo/gap/pad lanes)
        # out_ref : (BB, TP, H, GWtot)
        # mask_ref: (1, GWtot) f32 — 1.0 on image-interior lanes, 0.0 elsewhere
        # scratch : (ycan_ref,) with shape (BB, TP, HP, GWtot) iff sharpen_cycles > 0
        ycan_ref = scratch[0] if scratch else None

        # ---- stream channel-sum + temporal DIF conv per input frame ---------
        # For each input frame k, compute the 3-channel sum once and
        # accumulate coef[k-p] * chsum into every output frame p it feeds,
        # writing directly into the padded canvas interior (or out_ref when
        # there is no sharpen), so no (BB,T,H,GWtot) grey temporary exists.
        for k in range(T):
            chsum = x_ref[:, k, 0, :, :].astype(jnp.float32)
            for cc in range(1, C):
                chsum = chsum + x_ref[:, k, cc, :, :].astype(jnp.float32)
            p_lo = max(0, k - TK + 1)
            p_hi = min(TP - 1, k)
            for p in range(p_lo, p_hi + 1):
                val = coef[k - p] * chsum                # (BB, H, GWtot)
                first = (k == p)                         # tap 0 is the first touch
                if sharpen_cycles > 0:
                    if first:
                        ycan_ref[:, p, ph:ph + H, :] = val
                    else:
                        ycan_ref[:, p, ph:ph + H, :] = (
                            ycan_ref[:, p, ph:ph + H, :] + val)
                else:
                    if first:
                        out_ref[:, p, :, :] = val + norm_add
                    else:
                        out_ref[:, p, :, :] = out_ref[:, p, :, :] + val

        if sharpen_cycles == 0:
            return

        # ---- 'same'-padded Gaussian sharpen, in place in the canvas ----------
        # Halo rows must hold zeros; re-zeroed every step (cheap: 2*ph rows),
        # NOT gated on program_id==0 — see header comment (megacore safety).
        ycan_ref[:, :, 0:ph, :] = jnp.zeros((BB, TP, ph, GWtot), jnp.float32)
        ycan_ref[:, :, ph + H:HP, :] = jnp.zeros((BB, TP, ph, GWtot), jnp.float32)

        colmask = mask_ref[...]                          # (1, GWtot), hoisted

        for s in range(sharpen_cycles):
            last = (s == sharpen_cycles - 1)
            # Shift-and-accumulate conv: row shifts read the padded canvas,
            # lane shifts use the XLU (pltpu.roll).  Lane wrap-around only
            # lands on zero gap/pad lanes (invariant kept by colmask below).
            gsum = [None] * len(group_items)             # per-weight tap sums
            for dy in range(KH):
                row = ycan_ref[:, :, dy:dy + H, :]       # (BB, TP, H, GWtot)
                for gi, (_, taps) in enumerate(group_items):
                    for (tdy, tdx) in taps:
                        if tdy != dy:
                            continue
                        if tdx == ph:
                            tap = row
                        else:
                            tap = pltpu.roll(row, shift=(ph - tdx) % GWtot, axis=3)
                        gsum[gi] = tap if gsum[gi] is None else gsum[gi] + tap
            z = None
            for gi, (wgt, _) in enumerate(group_items):
                term = wgt * gsum[gi]
                z = term if z is None else z + term

            if last:
                # Gap/pad lanes hold wrap-around garbage (+ norm_add); the
                # wrapper unpack slices them away — kept in lockstep with the
                # packing layout below.
                out_ref[...] = z + norm_add
            else:
                # Re-zero halo/gap/pad lanes so the next cycle's rolls stay clean.
                ycan_ref[:, :, ph:ph + H, :] = z * colmask

    return kernel


# ---------------------------------------------------------------------------
# Wrapper: lane-dense packing, VMEM-model block sizing, unpacking
# ---------------------------------------------------------------------------
def mdfm_forward(X, param_motion):
    b, m, n, t, c, h, w = X.shape
    assert c == 3, "MDFM forward requires RGB input (c == 3)"

    t_conv_kernel = int(param_motion['k_frames']) - 2
    tw = kernel_weights_dif(t_conv_kernel)
    fw = kernel_weights_gaussian(int(param_motion['HW_conv_kernel']),
                                 param_motion['HW_conv_sigma'])
    sharpen_cycles = int(param_motion['sharpen_cycles'])
    norm_add = float(param_motion['normadd'])

    TK = int(tw.shape[0])
    TP = t - TK + 1
    KH = int(fw.shape[0])
    ph = KH // 2
    HP = h + 2 * ph

    # ---- lane-dense packing params: G haloed images per 128-lane row --------
    B = b * m * n
    WS = w + 2 * ph
    G = max(1, 128 // WS)
    NG = -(-B // G)                              # number of packed groups
    GWS = G * WS
    GWtot = -(-GWS // 128) * 128                 # canvas lane width (mult of 128)

    # ---- generation-aware block sizing from an explicit VMEM model ----------
    vmem_phys, two_tc = _tpu_vmem_and_cores()
    budget = int(vmem_phys * 0.7)                # v7x ~45 MiB, v5e/v6e ~90 MiB
    budget = max(32 << 20, min(budget, 96 << 20))

    isz = 4                                      # f32
    n_w = len({float(fw[i, j]) for i in range(KH) for j in range(KH)})
    per_group_in = t * c * h * GWtot * isz
    per_group_out = TP * h * GWtot * isz
    per_group_ycan = (TP * HP * GWtot * isz) if sharpen_cycles > 0 else 0
    per_group_tmp = (n_w + 4) * TP * h * GWtot * isz   # group sums + row/tap/z headroom
    per_group = 2 * per_group_in + 2 * per_group_out + per_group_ycan + per_group_tmp

    BB = max(1, budget // per_group)
    BB = min(BB, NG)
    if two_tc and NG >= 2:
        BB = min(BB, -(-NG // 2))                # both TensorCores get grid work
    BB = max(1, BB)
    NG_pad = -(-NG // BB) * BB                   # pad group count (no BB shrink loop)
    grid = (NG_pad // BB,)

    # ---- pack: one merged pad (batch fill + width halo), transpose, lane pad --
    x = X.astype(jnp.float32).reshape(B, t, c, h, w)
    x = jnp.pad(x, ((0, NG_pad * G - B), (0, 0), (0, 0), (0, 0), (ph, ph)))
    x = x.reshape(NG_pad, G, t, c, h, WS)
    x = jnp.transpose(x, (0, 2, 3, 4, 1, 5)).reshape(NG_pad, t, c, h, GWS)
    if GWtot > GWS:
        x = jnp.pad(x, ((0, 0), (0, 0), (0, 0), (0, 0), (0, GWtot - GWS)))
    # TODO(synk): move this pack / the unpack below into the kernel with
    # memory_space=pl.ANY + manual strided make_async_copy to kill the extra
    # XLA HBM passes; and optionally feed bf16 input (accumulate in f32).

    # interior-lane mask (zeros on per-image halos, inter-image gaps, align pad)
    colmask_np = np.zeros((1, GWtot), dtype=np.float32)
    for g in range(G):
        colmask_np[0, g * WS + ph: g * WS + ph + w] = 1.0
    colmask = jnp.asarray(colmask_np)

    kernel = make_mdfm_kernel(BB, t, c, TP, h, GWtot, tw, fw,
                              sharpen_cycles, norm_add)

    scratch_shapes = []
    if sharpen_cycles > 0:
        scratch_shapes = [pltpu.VMEM((BB, TP, HP, GWtot), jnp.float32)]

    vmem_limit = int(min(vmem_phys * 0.85, 100 << 20))

    out = pl.pallas_call(
        kernel,
        out_shape=jax.ShapeDtypeStruct((NG_pad, TP, h, GWtot), jnp.float32),
        grid_spec=pltpu.PrefetchScalarGridSpec(
            num_scalar_prefetch=0,
            grid=grid,
            in_specs=[
                pl.BlockSpec((1, GWtot), lambda i: (0, 0)),
                pl.BlockSpec((BB, t, c, h, GWtot), lambda i: (i, 0, 0, 0, 0)),
            ],
            out_specs=pl.BlockSpec((BB, TP, h, GWtot), lambda i: (i, 0, 0, 0)),
            scratch_shapes=scratch_shapes,
        ),
        compiler_params=pltpu.CompilerParams(
            dimension_semantics=("parallel",),
            vmem_limit_bytes=vmem_limit,
        ),
    )(colmask, x)

    # ---- unpack back to (b, m, n, TP, h, w) ---------------------------------
    out = out[:, :, :, :GWS].reshape(NG_pad, TP, h, G, WS)[..., ph:ph + w]
    out = jnp.transpose(out, (0, 3, 1, 2, 4)).reshape(NG_pad * G, TP, h, w)[:B]
    return out.reshape(b, m, n, TP, h, w)


# ---------------------------------------------------------------------------
# Pure-JAX reference (mirrors the PyTorch forward) for a correctness check.
# ---------------------------------------------------------------------------
def mdfm_reference(X, param_motion):
    b, m, n, t, c, h, w = X.shape
    tw = kernel_weights_dif(int(param_motion['k_frames']) - 2)
    fw = kernel_weights_gaussian(int(param_motion['HW_conv_kernel']),
                                 param_motion['HW_conv_sigma'])
    ph = fw.shape[0] // 2
    TK = tw.shape[0]
    TP = t - TK + 1
    x = X.reshape(b * m * n, t, c, h, w).astype(jnp.float32)
    grey = jnp.mean(x, axis=2)                                    # (B, t, h, w)
    y = sum(float(tw[k]) * grey[:, k:k + TP] for k in range(TK))
    for _ in range(int(param_motion['sharpen_cycles'])):
        yp = jnp.pad(y, ((0, 0), (0, 0), (ph, ph), (ph, ph)))
        y = sum(float(fw[i, j]) * yp[:, :, i:i + h, j:j + w]
                for i in range(fw.shape[0]) for j in range(fw.shape[0]))
    return (y + float(param_motion['normadd'])).reshape(b, m, n, TP, h, w)


if __name__ == "__main__":
    param_motion = {
        'sharpen_cycles': 2,
        'HW_conv_kernel': 3,
        'HW_conv_sigma': 1.0,
        'k_frames': 5,       # -> t_conv_kernel = 3, DIF weights [-0.5, 1, -0.5]
        'normadd': 0.5,
    }
    b, m, n, t, c, h, w = 2, 2, 2, 8, 3, 16, 16

    key = jax.random.PRNGKey(0)
    X = jax.random.uniform(key, (b, m, n, t, c, h, w), dtype=jnp.float32)

    fwd = jax.jit(lambda x: mdfm_forward(x, param_motion))
    out = jax.block_until_ready(fwd(X))

    t_prime = t - (param_motion['k_frames'] - 2) + 1
    assert out.shape == (b, m, n, t_prime, h, w), out.shape
    assert out.dtype == jnp.float32

    ref = jax.block_until_ready(mdfm_reference(X, param_motion))
    max_err = float(jnp.max(jnp.abs(out - ref)))
    assert jnp.allclose(out, ref, atol=1e-4, rtol=1e-4), max_err

    print("KERNEL_OK")
</pallas_src>

<mosaic_0001>
module attributes {stable_mosaic.version = 11 : i64} {
  func.func @kernel(%arg0: i32, %arg1: memref<1x128xf32, #tpu.memory_space<vmem>>, %arg2: memref<2x8x3x16x128xf32, #tpu.memory_space<vmem>>, %arg3: memref<2x6x16x128xf32, #tpu.memory_space<vmem>>, %arg4: memref<2x6x18x128xf32, #tpu.memory_space<vmem>>) attributes {dimension_semantics = [#tpu.dimension_semantics<parallel>], iteration_bounds = array<i64: 1>, scalar_prefetch = 0 : i64, scratch_operands = 1 : i64, tpu.core_type = #tpu.core_type<tc>, window_params = [{pipeline_mode = #tpu.pipeline_mode<synchronous>, transform_indices = @transform_0, window_bounds = array<i64: 1, 128>}, {transform_indices = @transform_1, window_bounds = array<i64: 2, 8, 3, 16, 128>}, {transform_indices = @transform_2, window_bounds = array<i64: 2, 6, 16, 128>}]} {
    %c0 = arith.constant 0 : index
    %c0_0 = arith.constant 0 : index
    %c0_1 = arith.constant 0 : index
    %c0_2 = arith.constant 0 : index
    %c0_3 = arith.constant 0 : index
    %0 = vector.load %arg2[%c0, %c0_0, %c0_1, %c0_2, %c0_3] : memref<2x8x3x16x128xf32, #tpu.memory_space<vmem>>, vector<2x1x1x16x128xf32>
    %1 = vector.shape_cast %0 : vector<2x1x1x16x128xf32> to vector<2x16x128xf32>
    %c0_4 = arith.constant 0 : index
    %c0_5 = arith.constant 0 : index
    %c1 = arith.constant 1 : index
    %c0_6 = arith.constant 0 : index
    %c0_7 = arith.constant 0 : index
    %2 = vector.load %arg2[%c0_4, %c0_5, %c1, %c0_6, %c0_7] : memref<2x8x3x16x128xf32, #tpu.memory_space<vmem>>, vector<2x1x1x16x128xf32>
    %3 = vector.shape_cast %2 : vector<2x1x1x16x128xf32> to vector<2x16x128xf32>
    %4 = arith.addf %1, %3 : vector<2x16x128xf32>
    %c0_8 = arith.constant 0 : index
    %c0_9 = arith.constant 0 : index
    %c2 = arith.constant 2 : index
    %c0_10 = arith.constant 0 : index
    %c0_11 = arith.constant 0 : index
    %5 = vector.load %arg2[%c0_8, %c0_9, %c2, %c0_10, %c0_11] : memref<2x8x3x16x128xf32, #tpu.memory_space<vmem>>, vector<2x1x1x16x128xf32>
    %6 = vector.shape_cast %5 : vector<2x1x1x16x128xf32> to vector<2x16x128xf32>
    %7 = arith.addf %4, %6 : vector<2x16x128xf32>
    %cst = arith.constant -0.166666672 : f32
    %8 = vector.broadcast %cst : f32 to vector<2x16x128xf32>
    %9 = arith.mulf %8, %7 : vector<2x16x128xf32>
    %c0_12 = arith.constant 0 : index
    %c0_13 = arith.constant 0 : index
    %c1_14 = arith.constant 1 : index
    %c0_15 = arith.constant 0 : index
    %10 = vector.load %arg4[%c0_12, %c0_13, %c1_14, %c0_15] : memref<2x6x18x128xf32, #tpu.memory_space<vmem>>, vector<2x1x16x128xf32>
    %11 = vector.shape_cast %10 : vector<2x1x16x128xf32> to vector<2x16x128xf32>
    %12 = vector.shape_cast %9 : vector<2x16x128xf32> to vector<2x1x16x128xf32>
    tpu.vector_store %arg4[%c0_12, %c0_13, %c1_14, %c0_15], %12 {strides = array<i32>} : memref<2x6x18x128xf32, #tpu.memory_space<vmem>>, vector<2x1x16x128xf32>,
    %c0_16 = arith.constant 0 : index
    %c1_17 = arith.constant 1 : index
    %c0_18 = arith.constant 0 : index
    %c0_19 = arith.constant 0 : index
    %c0_20 = arith.constant 0 : index
    %13 = vector.load %arg2[%c0_16, %c1_17, %c0_18, %c0_19, %c0_20] : memref<2x8x3x16x128xf32, #tpu.memory_space<vmem>>, vector<2x1x1x16x128xf32>
    %14 = vector.shape_cast %13 : vector<2x1x1x16x128xf32> to vector<2x16x128xf32>
    %c0_21 = arith.constant 0 : index
    %c1_22 = arith.constant 1 : index
    %c1_23 = arith.constant 1 : index
    %c0_24 = arith.constant 0 : index
    %c0_25 = arith.constant 0 : index
    %15 = vector.load %arg2[%c0_21, %c1_22, %c1_23, %c0_24, %c0_25] : memref<2x8x3x16x128xf32, #tpu.memory_space<vmem>>, vector<2x1x1x16x128xf32>
    %16 = vector.shape_cast %15 : vector<2x1x1x16x128xf32> to vector<2x16x128xf32>
    %17 = arith.addf %14, %16 : vector<2x16x128xf32>
    %c0_26 = arith.constant 0 : index
    %c1_27 = arith.constant 1 : index
    %c2_28 = arith.constant 2 : index
    %c0_29 = arith.constant 0 : index
    %c0_30 = arith.constant 0 : index
    %18 = vector.load %arg2[%c0_26, %c1_27, %c2_28, %c0_29, %c0_30] : memref<2x8x3x16x128xf32, #tpu.memory_space<vmem>>, vector<2x1x1x16x128xf32>
    %19 = vector.shape_cast %18 : vector<2x1x1x16x128xf32> to vector<2x16x128xf32>
    %20 = arith.addf %17, %19 : vector<2x16x128xf32>
    %cst_31 = arith.constant 0.333333343 : f32
    %21 = vector.broadcast %cst_31 : f32 to vector<2x16x128xf32>
    %22 = arith.mulf %21, %20 : vector<2x16x128xf32>
    %c0_32 = arith.constant 0 : index
    %c0_33 = arith.constant 0 : index
    %c1_34 = arith.constant 1 : index
    %c0_35 = arith.constant 0 : index
    %23 = vector.load %arg4[%c0_32, %c0_33, %c1_34, %c0_35] : memref<2x6x18x128xf32, #tpu.memory_space<vmem>>, vector<2x1x16x128xf32>
    %24 = vector.shape_cast %23 : vector<2x1x16x128xf32> to vector<2x16x128xf32>
    %25 = arith.addf %24, %22 : vector<2x16x128xf32>
    %c0_36 = arith.constant 0 : index
    %c0_37 = arith.constant 0 : index
    %c1_38 = arith.constant 1 : index
    %c0_39 = arith.constant 0 : index
    %26 = vector.load %arg4[%c0_36, %c0_37, %c1_38, %c0_39] : memref<2x6x18x128xf32, #tpu.memory_space<vmem>>, vector<2x1x16x128xf32>
    %27 = vector.shape_cast %26 : vector<2x1x16x128xf32> to vector<2x16x128xf32>
    %28 = vector.shape_cast %25 : vector<2x16x128xf32> to vector<2x1x16x128xf32>
    tpu.vector_store %arg4[%c0_36, %c0_37, %c1_38, %c0_39], %28 {strides = array<i32>} : memref<2x6x18x128xf32, #tpu.memory_space<vmem>>, vector<2x1x16x128xf32>,
    %cst_40 = arith.constant -0.166666672 : f32
    %29 = vector.broadcast %cst_40 : f32 to vector<2x16x128xf32>
    %30 = arith.mulf %29, %20 : vector<2x16x128xf32>
    %c0_41 = arith.constant 0 : index
    %c1_42 = arith.constant 1 : index
    %c1_43 = arith.constant 1 : index
    %c0_44 = arith.constant 0 : index
    %31 = vector.load %arg4[%c0_41, %c1_42, %c1_43, %c0_44] : memref<2x6x18x128xf32, #tpu.memory_space<vmem>>, vector<2x1x16x128xf32>
    %32 = vector.shape_cast %31 : vector<2x1x16x128xf32> to vector<2x16x128xf32>
    %33 = vector.shape_cast %30 : vector<2x16x128xf32> to vector<2x1x16x128xf32>
    tpu.vector_store %arg4[%c0_41, %c1_42, %c1_43, %c0_44], %33 {strides = array<i32>} : memref<2x6x18x128xf32, #tpu.memory_space<vmem>>, vector<2x1x16x128xf32>,
    %c0_45 = arith.constant 0 : index
    %c2_46 = arith.constant 2 : index
    %c0_47 = arith.constant 0 : index
    %c0_48 = arith.constant 0 : index
    %c0_49 = arith.constant 0 : index
    %34 = vector.load %arg2[%c0_45, %c2_46, %c0_47, %c0_48, %c0_49] : memref<2x8x3x16x128xf32, #tpu.memory_space<vmem>>, vector<2x1x1x16x128xf32>
    %35 = vector.shape_cast %34 : vector<2x1x1x16x128xf32> to vector<2x16x128xf32>
    %c0_50 = arith.constant 0 : index
    %c2_51 = arith.constant 2 : index
    %c1_52 = arith.constant 1 : index
    %c0_53 = arith.constant 0 : index
    %c0_54 = arith.constant 0 : index
    %36 = vector.load %arg2[%c0_50, %c2_51, %c1_52, %c0_53, %c0_54] : memref<2x8x3x16x128xf32, #tpu.memory_space<vmem>>, vector<2x1x1x16x128xf32>
    %37 = vector.shape_cast %36 : vector<2x1x1x16x128xf32> to vector<2x16x128xf32>
    %38 = arith.addf %35, %37 : vector<2x16x128xf32>
    %c0_55 = arith.constant 0 : index
    %c2_56 = arith.constant 2 : index
    %c2_57 = arith.constant 2 : index
    %c0_58 = arith.constant 0 : index
    %c0_59 = arith.constant 0 : index
    %39 = vector.load %arg2[%c0_55, %c2_56, %c2_57, %c0_58, %c0_59] : memref<2x8x3x16x128xf32, #tpu.memory_space<vmem>>, vector<2x1x1x16x128xf32>
    %40 = vector.shape_cast %39 : vector<2x1x1x16x128xf32> to vector<2x16x128xf32>
    %41 = arith.addf %38, %40 : vector<2x16x128xf32>
    %cst_60 = arith.constant -0.166666672 : f32
    %42 = vector.broadcast %cst_60 : f32 to vector<2x16x128xf32>
    %43 = arith.mulf %42, %41 : vector<2x16x128xf32>
    %c0_61 = arith.constant 0 : index
    %c0_62 = arith.constant 0 : index
    %c1_63 = arith.constant 1 : index
    %c0_64 = arith.constant 0 : index
    %44 = vector.load %arg4[%c0_61, %c0_62, %c1_63, %c0_64] : memref<2x6x18x128xf32, #tpu.memory_space<vmem>>, vector<2x1x16x128xf32>
    %45 = vector.shape_cast %44 : vector<2x1x16x128xf32> to vector<2x16x128xf32>
    %46 = arith.addf %45, %43 : vector<2x16x128xf32>
    %c0_65 = arith.constant 0 : index
    %c0_66 = arith.constant 0 : index
    %c1_67 = arith.constant 1 : index
    %c0_68 = arith.constant 0 : index
    %47 = vector.load %arg4[%c0_65, %c0_66, %c1_67, %c0_68] : memref<2x6x18x128xf32, #tpu.memory_space<vmem>>, vector<2x1x16x128xf32>
    %48 = vector.shape_cast %47 : vector<2x1x16x128xf32> to vector<2x16x128xf32>
    %49 = vector.shape_cast %46 : vector<2x16x128xf32> to vector<2x1x16x128xf32>
    tpu.vector_store %arg4[%c0_65, %c0_66, %c1_67, %c0_68], %49 {strides = array<i32>} : memref<2x6x18x128xf32, #tpu.memory_space<vmem>>, vector<2x1x16x128xf32>,
    %cst_69 = arith.constant 0.333333343 : f32
    %50 = vector.broadcast %cst_69 : f32 to vector<2x16x128xf32>
    %51 = arith.mulf %50, %41 : vector<2x16x128xf32>
    %c0_70 = arith.constant 0 : index
    %c1_71 = arith.constant 1 : index
    %c1_72 = arith.constant 1 : index
    %c0_73 = arith.constant 0 : index
    %52 = vector.load %arg4[%c0_70, %c1_71, %c1_72, %c0_73] : memref<2x6x18x128xf32, #tpu.memory_space<vmem>>, vector<2x1x16x128xf32>
    %53 = vector.shape_cast %52 : vector<2x1x16x128xf32> to vector<2x16x128xf32>
    %54 = arith.addf %53, %51 : vector<2x16x128xf32>
    %c0_74 = arith.constant 0 : index
    %c1_75 = arith.constant 1 : index
    %c1_76 = arith.constant 1 : index
    %c0_77 = arith.constant 0 : index
    %55 = vector.load %arg4[%c0_74, %c1_75, %c1_76, %c0_77] : memref<2x6x18x128xf32, #tpu.memory_space<vmem>>, vector<2x1x16x128xf32>
    %56 = vector.shape_cast %55 : vector<2x1x16x128xf32> to vector<2x16x128xf32>
    %57 = vector.shape_cast %54 : vector<2x16x128xf32> to vector<2x1x16x128xf32>
    tpu.vector_store %arg4[%c0_74, %c1_75, %c1_76, %c0_77], %57 {strides = array<i32>} : memref<2x6x18x128xf32, #tpu.memory_space<vmem>>, vector<2x1x16x128xf32>,
    %cst_78 = arith.constant -0.166666672 : f32
    %58 = vector.broadcast %cst_78 : f32 to vector<2x16x128xf32>
    %59 = arith.mulf %58, %41 : vector<2x16x128xf32>
    %c0_79 = arith.constant 0 : index
    %c2_80 = arith.constant 2 : index
    %c1_81 = arith.constant 1 : index
    %c0_82 = arith.constant 0 : index
    %60 = vector.load %arg4[%c0_79, %c2_80, %c1_81, %c0_82] : memref<2x6x18x128xf32, #tpu.memory_space<vmem>>, vector<2x1x16x128xf32>
    %61 = vector.shape_cast %60 : vector<2x1x16x128xf32> to vector<2x16x128xf32>
    %62 = vector.shape_cast %59 : vector<2x16x128xf32> to vector<2x1x16x128xf32>
    tpu.vector_store %arg4[%c0_79, %c2_80, %c1_81, %c0_82], %62 {strides = array<i32>} : memref<2x6x18x128xf32, #tpu.memory_space<vmem>>, vector<2x1x16x128xf32>,
    %c0_83 = arith.constant 0 : index
    %c3 = arith.constant 3 : index
    %c0_84 = arith.constant 0 : index
    %c0_85 = arith.constant 0 : index
    %c0_86 = arith.constant 0 : index
    %63 = vector.load %arg2[%c0_83, %c3, %c0_84, %c0_85, %c0_86] : memref<2x8x3x16x128xf32, #tpu.memory_space<vmem>>, vector<2x1x1x16x128xf32>
    %64 = vector.shape_cast %63 : vector<2x1x1x16x128xf32> to vector<2x16x128xf32>
    %c0_87 = arith.constant 0 : index
    %c3_88 = arith.constant 3 : index
    %c1_89 = arith.constant 1 : index
    %c0_90 = arith.constant 0 : index
    %c0_91 = arith.constant 0 : index
    %65 = vector.load %arg2[%c0_87, %c3_88, %c1_89, %c0_90, %c0_91] : memref<2x8x3x16x128xf32, #tpu.memory_space<vmem>>, vector<2x1x1x16x128xf32>
    %66 = vector.shape_cast %65 : vector<2x1x1x16x128xf32> to vector<2x16x128xf32>
    %67 = arith.addf %64, %66 : vector<2x16x128xf32>
    %c0_92 = arith.constant 0 : index
    %c3_93 = arith.constant 3 : index
    %c2_94 = arith.constant 2 : index
    %c0_95 = arith.constant 0 : index
    %c0_96 = arith.constant 0 : index
    %68 = vector.load %arg2[%c0_92, %c3_93, %c2_94, %c0_95, %c0_96] : memref<2x8x3x16x128xf32, #tpu.memory_space<vmem>>, vector<2x1x1x16x128xf32>
    %69 = vector.shape_cast %68 : vector<2x1x1x16x128xf32> to vector<2x16x128xf32>
    %70 = arith.addf %67, %69 : vector<2x16x128xf32>
    %cst_97 = arith.constant -0.166666672 : f32
    %71 = vector.broadcast %cst_97 : f32 to vector<2x16x128xf32>
    %72 = arith.mulf %71, %70 : vector<2x16x128xf32>
    %c0_98 = arith.constant 0 : index
    %c1_99 = arith.constant 1 : index
    %c1_100 = arith.constant 1 : index
    %c0_101 = arith.constant 0 : index
    %73 = vector.load %arg4[%c0_98, %c1_99, %c1_100, %c0_101] : memref<2x6x18x128xf32, #tpu.memory_space<vmem>>, vector<2x1x16x128xf32>
    %74 = vector.shape_cast %73 : vector<2x1x16x128xf32> to vector<2x16x128xf32>
    %75 = arith.addf %74, %72 : vector<2x16x128xf32>
    %c0_102 = arith.constant 0 : index
    %c1_103 = arith.constant 1 : index
    %c1_104 = arith.constant 1 : index
    %c0_105 = arith.constant 0 : index
    %76 = vector.load %arg4[%c0_102, %c1_103, %c1_104, %c0_105] : memref<2x6x18x128xf32, #tpu.memory_space<vmem>>, vector<2x1x16x128xf32>
    %77 = vector.shape_cast %76 : vector<2x1x16x128xf32> to vector<2x16x128xf32>
    %78 = vector.shape_cast %75 : vector<2x16x128xf32> to vector<2x1x16x128xf32>
    tpu.vector_store %arg4[%c0_102, %c1_103, %c1_104, %c0_105], %78 {strides = array<i32>} : memref<2x6x18x128xf32, #tpu.memory_space<vmem>>, vector<2x1x16x128xf32>,
    %cst_106 = arith.constant 0.333333343 : f32
    %79 = vector.broadcast %cst_106 : f32 to vector<2x16x128xf32>
    %80 = arith.mulf %79, %70 : vector<2x16x128xf32>
    %c0_107 = arith.constant 0 : index
    %c2_108 = arith.constant 2 : index
    %c1_109 = arith.constant 1 : index
    %c0_110 = arith.constant 0 : index
    %81 = vector.load %arg4[%c0_107, %c2_108, %c1_109, %c0_110] : memref<2x6x18x128xf32, #tpu.memory_space<vmem>>, vector<2x1x16x128xf32>
    %82 = vector.shape_cast %81 : vector<2x1x16x128xf32> to vector<2x16x128xf32>
    %83 = arith.addf %82, %80 : vector<2x16x128xf32>
    %c0_111 = arith.constant 0 : index
    %c2_112 = arith.constant 2 : index
    %c1_113 = arith.constant 1 : index
    %c0_114 = arith.constant 0 : index
    %84 = vector.load %arg4[%c0_111, %c2_112, %c1_113, %c0_114] : memref<2x6x18x128xf32, #tpu.memory_space<vmem>>, vector<2x1x16x128xf32>
    %85 = vector.shape_cast %84 : vector<2x1x16x128xf32> to vector<2x16x128xf32>
    %86 = vector.shape_cast %83 : vector<2x16x128xf32> to vector<2x1x16x128xf32>
    tpu.vector_store %arg4[%c0_111, %c2_112, %c1_113, %c0_114], %86 {strides = array<i32>} : memref<2x6x18x128xf32, #tpu.memory_space<vmem>>, vector<2x1x16x128xf32>,
    %cst_115 = arith.constant -0.166666672 : f32
    %87 = vector.broadcast %cst_115 : f32 to vector<2x16x128xf32>
    %88 = arith.mulf %87, %70 : vector<2x16x128xf32>
    %c0_116 = arith.constant 0 : index
    %c3_117 = arith.constant 3 : index
    %c1_118 = arith.constant 1 : index
    %c0_119 = arith.constant 0 : index
    %89 = vector.load %arg4[%c0_116, %c3_117, %c1_118, %c0_119] : memref<2x6x18x128xf32, #tpu.memory_space<vmem>>, vector<2x1x16x128xf32>
    %90 = vector.shape_cast %89 : vector<2x1x16x128xf32> to vector<2x16x128xf32>
    %91 = vector.shape_cast %88 : vector<2x16x128xf32> to vector<2x1x16x128xf32>
    tpu.vector_store %arg4[%c0_116, %c3_117, %c1_118, %c0_119], %91 {strides = array<i32>} : memref<2x6x18x128xf32, #tpu.memory_space<vmem>>, vector<2x1x16x128xf32>,
    %c0_120 = arith.constant 0 : index
    %c4 = arith.constant 4 : index
    %c0_121 = arith.constant 0 : index
    %c0_122 = arith.constant 0 : index
    %c0_123 = arith.constant 0 : index
    %92 = vector.load %arg2[%c0_120, %c4, %c0_121, %c0_122, %c0_123] : memref<2x8x3x16x128xf32, #tpu.memory_space<vmem>>, vector<2x1x1x16x128xf32>
    %93 = vector.shape_cast %92 : vector<2x1x1x16x128xf32> to vector<2x16x128xf32>
    %c0_124 = arith.constant 0 : index
    %c4_125 = arith.constant 4 : index
    %c1_126 = arith.constant 1 : index
    %c0_127 = arith.constant 0 : index
    %c0_128 = arith.constant 0 : index
    %94 = vector.load %arg2[%c0_124, %c4_125, %c1_126, %c0_127, %c0_128] : memref<2x8x3x16x128xf32, #tpu.memory_space<vmem>>, vector<2x1x1x16x128xf32>
    %95 = vector.shape_cast %94 : vector<2x1x1x16x128xf32> to vector<2x16x128xf32>
    %96 = arith.addf %93, %95 : vector<2x16x128xf32>
    %c0_129 = arith.constant 0 : index
    %c4_130 = arith.constant 4 : index
    %c2_131 = arith.constant 2 : index
    %c0_132 = arith.constant 0 : index
    %c0_133 = arith.constant 0 : index
    %97 = vector.load %arg2[%c0_129, %c4_130, %c2_131, %c0_132, %c0_133] : memref<2x8x3x16x128xf32, #tpu.memory_space<vmem>>, vector<2x1x1x16x128xf32>
    %98 = vector.shape_cast %97 : vector<2x1x1x16x128xf32> to vector<2x16x128xf32>
    %99 = arith.addf %96, %98 : vector<2x16x128xf32>
    %cst_134 = arith.constant -0.166666672 : f32
    %100 = vector.broadcast %cst_134 : f32 to vector<2x16x128xf32>
    %101 = arith.mulf %100, %99 : vector<2x16x128xf32>
    %c0_135 = arith.constant 0 : index
    %c2_136 = arith.constant 2 : index
    %c1_137 = arith.constant 1 : index
    %c0_138 = arith.constant 0 : index
    %102 = vector.load %arg4[%c0_135, %c2_136, %c1_137, %c0_138] : memref<2x6x18x128xf32, #tpu.memory_space<vmem>>, vector<2x1x16x128xf32>
    %103 = vector.shape_cast %102 : vector<2x1x16x128xf32> to vector<2x16x128xf32>
    %104 = arith.addf %103, %101 : vector<2x16x128xf32>
    %c0_139 = arith.constant 0 : index
    %c2_140 = arith.constant 2 : index
    %c1_141 = arith.constant 1 : index
    %c0_142 = arith.constant 0 : index
    %105 = vector.load %arg4[%c0_139, %c2_140, %c1_141, %c0_142] : memref<2x6x18x128xf32, #tpu.memory_space<vmem>>, vector<2x1x16x128xf32>
    %106 = vector.shape_cast %105 : vector<2x1x16x128xf32> to vector<2x16x128xf32>
    %107 = vector.shape_cast %104 : vector<2x16x128xf32> to vector<2x1x16x128xf32>
    tpu.vector_store %arg4[%c0_139, %c2_140, %c1_141, %c0_142], %107 {strides = array<i32>} : memref<2x6x18x128xf32, #tpu.memory_space<vmem>>, vector<2x1x16x128xf32>,
    %cst_143 = arith.constant 0.333333343 : f32
    %108 = vector.broadcast %cst_143 : f32 to vector<2x16x128xf32>
    %109 = arith.mulf %108, %99 : vector<2x16x128xf32>
    %c0_144 = arith.constant 0 : index
    %c3_145 = arith.constant 3 : index
    %c1_146 = arith.constant 1 : index
    %c0_147 = arith.constant 0 : index
    %110 = vector.load %arg4[%c0_144, %c3_145, %c1_146, %c0_147] : memref<2x6x18x128xf32, #tpu.memory_space<vmem>>, vector<2x1x16x128xf32>
    %111 = vector.shape_cast %110 : vector<2x1x16x128xf32> to vector<2x16x128xf32>
    %112 = arith.addf %111, %109 : vector<2x16x128xf32>
    %c0_148 = arith.constant 0 : index
    %c3_149 = arith.constant 3 : index
    %c1_150 = arith.constant 1 : index
    %c0_151 = arith.constant 0 : index
    %113 = vector.load %arg4[%c0_148, %c3_149, %c1_150, %c0_151] : memref<2x6x18x128xf32, #tpu.memory_space<vmem>>, vector<2x1x16x128xf32>
    %114 = vector.shape_cast %113 : vector<2x1x16x128xf32> to vector<2x16x128xf32>
    %115 = vector.shape_cast %112 : vector<2x16x128xf32> to vector<2x1x16x128xf32>
    tpu.vector_store %arg4[%c0_148, %c3_149, %c1_150, %c0_151], %115 {strides = array<i32>} : memref<2x6x18x128xf32, #tpu.memory_space<vmem>>, vector<2x1x16x128xf32>,
    %cst_152 = arith.constant -0.166666672 : f32
    %116 = vector.broadcast %cst_152 : f32 to vector<2x16x128xf32>
    %117 = arith.mulf %116, %99 : vector<2x16x128xf32>
    %c0_153 = arith.constant 0 : index
    %c4_154 = arith.constant 4 : index
    %c1_155 = arith.constant 1 : index
    %c0_156 = arith.constant 0 : index
    %118 = vector.load %arg4[%c0_153, %c4_154, %c1_155, %c0_156] : memref<2x6x18x128xf32, #tpu.memory_space<vmem>>, vector<2x1x16x128xf32>
    %119 = vector.shape_cast %118 : vector<2x1x16x128xf32> to vector<2x16x128xf32>
    %120 = vector.shape_cast %117 : vector<2x16x128xf32> to vector<2x1x16x128xf32>
    tpu.vector_store %arg4[%c0_153, %c4_154, %c1_155, %c0_156], %120 {strides = array<i32>} : memref<2x6x18x128xf32, #tpu.memory_space<vmem>>, vector<2x1x16x128xf32>,
    %c0_157 = arith.constant 0 : index
    %c5 = arith.constant 5 : index
    %c0_158 = arith.constant 0 : index
    %c0_159 = arith.constant 0 : index
    %c0_160 = arith.constant 0 : index
    %121 = vector.load %arg2[%c0_157, %c5, %c0_158, %c0_159, %c0_160] : memref<2x8x3x16x128xf32, #tpu.memory_space<vmem>>, vector<2x1x1x16x128xf32>
    %122 = vector.shape_cast %121 : vector<2x1x1x16x128xf32> to vector<2x16x128xf32>
    %c0_161 = arith.constant 0 : index
    %c5_162 = arith.constant 5 : index
    %c1_163 = arith.constant 1 : index
    %c0_164 = arith.constant 0 : index
    %c0_165 = arith.constant 0 : index
    %123 = vector.load %arg2[%c0_161, %c5_162, %c1_163, %c0_164, %c0_165] : memref<2x8x3x16x128xf32, #tpu.memory_space<vmem>>, vector<2x1x1x16x128xf32>
    %124 = vector.shape_cast %123 : vector<2x1x1x16x128xf32> to vector<2x16x128xf32>
    %125 = arith.addf %122, %124 : vector<2x16x128xf32>
    %c0_166 = arith.constant 0 : index
    %c5_167 = arith.constant 5 : index
    %c2_168 = arith.constant 2 : index
    %c0_169 = arith.constant 0 : index
    %c0_170 = arith.constant 0 : index
    %126 = vector.load %arg2[%c0_166, %c5_167, %c2_168, %c0_169, %c0_170] : memref<2x8x3x16x128xf32, #tpu.memory_space<vmem>>, vector<2x1x1x16x128xf32>
    %127 = vector.shape_cast %126 : vector<2x1x1x16x128xf32> to vector<2x16x128xf32>
    %128 = arith.addf %125, %127 : vector<2x16x128xf32>
    %cst_171 = arith.constant -0.166666672 : f32
    %129 = vector.broadcast %cst_171 : f32 to vector<2x16x128xf32>
    %130 = arith.mulf %129, %128 : vector<2x16x128xf32>
    %c0_172 = arith.constant 0 : index
    %c3_173 = arith.constant 3 : index
    %c1_174 = arith.constant 1 : index
    %c0_175 = arith.constant 0 : index
    %131 = vector.load %arg4[%c0_172, %c3_173, %c1_174, %c0_175] : memref<2x6x18x128xf32, #tpu.memory_space<vmem>>, vector<2x1x16x128xf32>
    %132 = vector.shape_cast %131 : vector<2x1x16x128xf32> to vector<2x16x128xf32>
    %133 = arith.addf %132, %130 : vector<2x16x128xf32>
    %c0_176 = arith.constant 0 : index
    %c3_177 = arith.constant 3 : index
    %c1_178 = arith.constant 1 : index
    %c0_179 = arith.constant 0 : index
    %134 = vector.load %arg4[%c0_176, %c3_177, %c1_178, %c0_179] : memref<2x6x18x128xf32, #tpu.memory_space<vmem>>, vector<2x1x16x128xf32>
    %135 = vector.shape_cast %134 : vector<2x1x16x128xf32> to vector<2x16x128xf32>
    %136 = vector.shape_cast %133 : vector<2x16x128xf32> to vector<2x1x16x128xf32>
    tpu.vector_store %arg4[%c0_176, %c3_177, %c1_178, %c0_179], %136 {strides = array<i32>} : memref<2x6x18x128xf32, #tpu.memory_space<vmem>>, vector<2x1x16x128xf32>,
    %cst_180 = arith.constant 0.333333343 : f32
    %137 = vector.broadcast %cst_180 : f32 to vector<2x16x128xf32>
    %138 = arith.mulf %137, %128 : vector<2x16x128xf32>
    %c0_181 = arith.constant 0 : index
    %c4_182 = arith.constant 4 : index
    %c1_183 = arith.constant 1 : index
    %c0_184 = arith.constant 0 : index
    %139 = vector.load %arg4[%c0_181, %c4_182, %c1_183, %c0_184] : memref<2x6x18x128xf32, #tpu.memory_space<vmem>>, vector<2x1x16x128xf32>
    %140 = vector.shape_cast %139 : vector<2x1x16x128xf32> to vector<2x16x128xf32>
    %141 = arith.addf %140, %138 : vector<2x16x128xf32>
    %c0_185 = arith.constant 0 : index
    %c4_186 = arith.constant 4 : index
    %c1_187 = arith.constant 1 : index
    %c0_188 = arith.constant 0 : index
    %142 = vector.load %arg4[%c0_185, %c4_186, %c1_187, %c0_188] : memref<2x6x18x128xf32, #tpu.memory_space<vmem>>, vector<2x1x16x128xf32>
    %143 = vector.shape_cast %142 : vector<2x1x16x128xf32> to vector<2x16x128xf32>
    %144 = vector.shape_cast %141 : vector<2x16x128xf32> to vector<2x1x16x128xf32>
    tpu.vector_store %arg4[%c0_185, %c4_186, %c1_187, %c0_188], %144 {strides = array<i32>} : memref<2x6x18x128xf32, #tpu.memory_space<vmem>>, vector<2x1x16x128xf32>,
    %cst_189 = arith.constant -0.166666672 : f32
    %145 = vector.broadcast %cst_189 : f32 to vector<2x16x128xf32>
    %146 = arith.mulf %145, %128 : vector<2x16x128xf32>
    %c0_190 = arith.constant 0 : index
    %c5_191 = arith.constant 5 : index
    %c1_192 = arith.constant 1 : index
    %c0_193 = arith.constant 0 : index
    %147 = vector.load %arg4[%c0_190, %c5_191, %c1_192, %c0_193] : memref<2x6x18x128xf32, #tpu.memory_space<vmem>>, vector<2x1x16x128xf32>
    %148 = vector.shape_cast %147 : vector<2x1x16x128xf32> to vector<2x16x128xf32>
    %149 = vector.shape_cast %146 : vector<2x16x128xf32> to vector<2x1x16x128xf32>
    tpu.vector_store %arg4[%c0_190, %c5_191, %c1_192, %c0_193], %149 {strides = array<i32>} : memref<2x6x18x128xf32, #tpu.memory_space<vmem>>, vector<2x1x16x128xf32>,
    %c0_194 = arith.constant 0 : index
    %c6 = arith.constant 6 : index
    %c0_195 = arith.constant 0 : index
    %c0_196 = arith.constant 0 : index
    %c0_197 = arith.constant 0 : index
    %150 = vector.load %arg2[%c0_194, %c6, %c0_195, %c0_196, %c0_197] : memref<2x8x3x16x128xf32, #tpu.memory_space<vmem>>, vector<2x1x1x16x128xf32>
    %151 = vector.shape_cast %150 : vector<2x1x1x16x128xf32> to vector<2x16x128xf32>
    %c0_198 = arith.constant 0 : index
    %c6_199 = arith.constant 6 : index
    %c1_200 = arith.constant 1 : index
    %c0_201 = arith.constant 0 : index
    %c0_202 = arith.constant 0 : index
    %152 = vector.load %arg2[%c0_198, %c6_199, %c1_200, %c0_201, %c0_202] : memref<2x8x3x16x128xf32, #tpu.memory_space<vmem>>, vector<2x1x1x16x128xf32>
    %153 = vector.shape_cast %152 : vector<2x1x1x16x128xf32> to vector<2x16x128xf32>
    %154 = arith.addf %151, %153 : vector<2x16x128xf32>
    %c0_203 = arith.constant 0 : index
    %c6_204 = arith.constant 6 : index
    %c2_205 = arith.constant 2 : index
    %c0_206 = arith.constant 0 : index
    %c0_207 = arith.constant 0 : index
    %155 = vector.load %arg2[%c0_203, %c6_204, %c2_205, %c0_206, %c0_207] : memref<2x8x3x16x128xf32, #tpu.memory_space<vmem>>, vector<2x1x1x16x128xf32>
    %156 = vector.shape_cast %155 : vector<2x1x1x16x128xf32> to vector<2x16x128xf32>
    %157 = arith.addf %154, %156 : vector<2x16x128xf32>
    %cst_208 = arith.constant -0.166666672 : f32
    %158 = vector.broadcast %cst_208 : f32 to vector<2x16x128xf32>
    %159 = arith.mulf %158, %157 : vector<2x16x128xf32>
    %c0_209 = arith.constant 0 : index
    %c4_210 = arith.constant 4 : index
    %c1_211 = arith.constant 1 : index
    %c0_212 = arith.constant 0 : index
    %160 = vector.load %arg4[%c0_209, %c4_210, %c1_211, %c0_212] : memref<2x6x18x128xf32, #tpu.memory_space<vmem>>, vector<2x1x16x128xf32>
    %161 = vector.shape_cast %160 : vector<2x1x16x128xf32> to vector<2x16x128xf32>
    %162 = arith.addf %161, %159 : vector<2x16x128xf32>
    %c0_213 = arith.constant 0 : index
    %c4_214 = arith.constant 4 : index
    %c1_215 = arith.constant 1 : index
    %c0_216 = arith.constant 0 : index
    %163 = vector.load %arg4[%c0_213, %c4_214, %c1_215, %c0_216] : memref<2x6x18x128xf32, #tpu.memory_space<vmem>>, vector<2x1x16x128xf32>
    %164 = vector.shape_cast %163 : vector<2x1x16x128xf32> to vector<2x16x128xf32>
    %165 = vector.shape_cast %162 : vector<2x16x128xf32> to vector<2x1x16x128xf32>
    tpu.vector_store %arg4[%c0_213, %c4_214, %c1_215, %c0_216], %165 {strides = array<i32>} : memref<2x6x18x128xf32, #tpu.memory_space<vmem>>, vector<2x1x16x128xf32>,
    %cst_217 = arith.constant 0.333333343 : f32
    %166 = vector.broadcast %cst_217 : f32 to vector<2x16x128xf32>
    %167 = arith.mulf %166, %157 : vector<2x16x128xf32>
    %c0_218 = arith.constant 0 : index
    %c5_219 = arith.constant 5 : index
    %c1_220 = arith.constant 1 : index
    %c0_221 = arith.constant 0 : index
    %168 = vector.load %arg4[%c0_218, %c5_219, %c1_220, %c0_221] : memref<2x6x18x128xf32, #tpu.memory_space<vmem>>, vector<2x1x16x128xf32>
    %169 = vector.shape_cast %168 : vector<2x1x16x128xf32> to vector<2x16x128xf32>
    %170 = arith.addf %169, %167 : vector<2x16x128xf32>
    %c0_222 = arith.constant 0 : index
    %c5_223 = arith.constant 5 : index
    %c1_224 = arith.constant 1 : index
    %c0_225 = arith.constant 0 : index
    %171 = vector.load %arg4[%c0_222, %c5_223, %c1_224, %c0_225] : memref<2x6x18x128xf32, #tpu.memory_space<vmem>>, vector<2x1x16x128xf32>
    %172 = vector.shape_cast %171 : vector<2x1x16x128xf32> to vector<2x16x128xf32>
    %173 = vector.shape_cast %170 : vector<2x16x128xf32> to vector<2x1x16x128xf32>
    tpu.vector_store %arg4[%c0_222, %c5_223, %c1_224, %c0_225], %173 {strides = array<i32>} : memref<2x6x18x128xf32, #tpu.memory_space<vmem>>, vector<2x1x16x128xf32>,
    %c0_226 = arith.constant 0 : index
    %c7 = arith.constant 7 : index
    %c0_227 = arith.constant 0 : index
    %c0_228 = arith.constant 0 : index
    %c0_229 = arith.constant 0 : index
    %174 = vector.load %arg2[%c0_226, %c7, %c0_227, %c0_228, %c0_229] : memref<2x8x3x16x128xf32, #tpu.memory_space<vmem>>, vector<2x1x1x16x128xf32>
    %175 = vector.shape_cast %174 : vector<2x1x1x16x128xf32> to vector<2x16x128xf32>
    %c0_230 = arith.constant 0 : index
    %c7_231 = arith.constant 7 : index
    %c1_232 = arith.constant 1 : index
    %c0_233 = arith.constant 0 : index
    %c0_234 = arith.constant 0 : index
    %176 = vector.load %arg2[%c0_230, %c7_231, %c1_232, %c0_233, %c0_234] : memref<2x8x3x16x128xf32, #tpu.memory_space<vmem>>, vector<2x1x1x16x128xf32>
    %177 = vector.shape_cast %176 : vector<2x1x1x16x128xf32> to vector<2x16x128xf32>
    %178 = arith.addf %175, %177 : vector<2x16x128xf32>
    %c0_235 = arith.constant 0 : index
    %c7_236 = arith.constant 7 : index
    %c2_237 = arith.constant 2 : index
    %c0_238 = arith.constant 0 : index
    %c0_239 = arith.constant 0 : index
    %179 = vector.load %arg2[%c0_235, %c7_236, %c2_237, %c0_238, %c0_239] : memref<2x8x3x16x128xf32, #tpu.memory_space<vmem>>, vector<2x1x1x16x128xf32>
    %180 = vector.shape_cast %179 : vector<2x1x1x16x128xf32> to vector<2x16x128xf32>
    %181 = arith.addf %178, %180 : vector<2x16x128xf32>
    %cst_240 = arith.constant -0.166666672 : f32
    %182 = vector.broadcast %cst_240 : f32 to vector<2x16x128xf32>
    %183 = arith.mulf %182, %181 : vector<2x16x128xf32>
    %c0_241 = arith.constant 0 : index
    %c5_242 = arith.constant 5 : index
    %c1_243 = arith.constant 1 : index
    %c0_244 = arith.constant 0 : index
    %184 = vector.load %arg4[%c0_241, %c5_242, %c1_243, %c0_244] : memref<2x6x18x128xf32, #tpu.memory_space<vmem>>, vector<2x1x16x128xf32>
    %185 = vector.shape_cast %184 : vector<2x1x16x128xf32> to vector<2x16x128xf32>
    %186 = arith.addf %185, %183 : vector<2x16x128xf32>
    %c0_245 = arith.constant 0 : index
    %c5_246 = arith.constant 5 : index
    %c1_247 = arith.constant 1 : index
    %c0_248 = arith.constant 0 : index
    %187 = vector.load %arg4[%c0_245, %c5_246, %c1_247, %c0_248] : memref<2x6x18x128xf32, #tpu.memory_space<vmem>>, vector<2x1x16x128xf32>
    %188 = vector.shape_cast %187 : vector<2x1x16x128xf32> to vector<2x16x128xf32>
    %189 = vector.shape_cast %186 : vector<2x16x128xf32> to vector<2x1x16x128xf32>
    tpu.vector_store %arg4[%c0_245, %c5_246, %c1_247, %c0_248], %189 {strides = array<i32>} : memref<2x6x18x128xf32, #tpu.memory_space<vmem>>, vector<2x1x16x128xf32>,
    %cst_249 = arith.constant 0.000000e+00 : f32
    %190 = vector.broadcast %cst_249 : f32 to vector<2x6x1x128xf32>
    %c0_250 = arith.constant 0 : index
    %c0_251 = arith.constant 0 : index
    %c0_252 = arith.constant 0 : index
    %c0_253 = arith.constant 0 : index
    %191 = vector.load %arg4[%c0_250, %c0_251, %c0_252, %c0_253] : memref<2x6x18x128xf32, #tpu.memory_space<vmem>>, vector<2x6x1x128xf32>
    tpu.vector_store %arg4[%c0_250, %c0_251, %c0_252, %c0_253], %190 {strides = array<i32>} : memref<2x6x18x128xf32, #tpu.memory_space<vmem>>, vector<2x6x1x128xf32>,
    %cst_254 = arith.constant 0.000000e+00 : f32
    %192 = vector.broadcast %cst_254 : f32 to vector<2x6x1x128xf32>
    %c0_255 = arith.constant 0 : index
    %c0_256 = arith.constant 0 : index
    %c17 = arith.constant 17 : index
    %c0_257 = arith.constant 0 : index
    %193 = vector.load %arg4[%c0_255, %c0_256, %c17, %c0_257] : memref<2x6x18x128xf32, #tpu.memory_space<vmem>>, vector<2x6x1x128xf32>
    tpu.vector_store %arg4[%c0_255, %c0_256, %c17, %c0_257], %192 {strides = array<i32>} : memref<2x6x18x128xf32, #tpu.memory_space<vmem>>, vector<2x6x1x128xf32>,
    %c0_258 = arith.constant 0 : index
    %c0_259 = arith.constant 0 : index
    %194 = vector.load %arg1[%c0_258, %c0_259] : memref<1x128xf32, #tpu.memory_space<vmem>>, vector<1x128xf32>
    %c0_260 = arith.constant 0 : index
    %c0_261 = arith.constant 0 : index
    %c0_262 = arith.constant 0 : index
    %c0_263 = arith.constant 0 : index
    %195 = vector.load %arg4[%c0_260, %c0_261, %c0_262, %c0_263] : memref<2x6x18x128xf32, #tpu.memory_space<vmem>>, vector<2x6x16x128xf32>
    %c1_i32 = arith.constant 1 : i32
    %196 = tpu.dynamic_rotate %195 by %c1_i32 dim 3 : vector<2x6x16x128xf32>, i32 -> vector<2x6x16x128xf32>
    %c127_i32 = arith.constant 127 : i32
    %197 = tpu.dynamic_rotate %195 by %c127_i32 dim 3 : vector<2x6x16x128xf32>, i32 -> vector<2x6x16x128xf32>
    %198 = arith.addf %196, %197 : vector<2x6x16x128xf32>
    %c0_264 = arith.constant 0 : index
    %c0_265 = arith.constant 0 : index
    %c1_266 = arith.constant 1 : index
    %c0_267 = arith.constant 0 : index
    %199 = vector.load %arg4[%c0_264, %c0_265, %c1_266, %c0_267] : memref<2x6x18x128xf32, #tpu.memory_space<vmem>>, vector<2x6x16x128xf32>
    %c1_i32_268 = arith.constant 1 : i32
    %200 = tpu.dynamic_rotate %199 by %c1_i32_268 dim 3 : vector<2x6x16x128xf32>, i32 -> vector<2x6x16x128xf32>
    %201 = arith.addf %195, %200 : vector<2x6x16x128xf32>
    %c127_i32_269 = arith.constant 127 : i32
    %202 = tpu.dynamic_rotate %199 by %c127_i32_269 dim 3 : vector<2x6x16x128xf32>, i32 -> vector<2x6x16x128xf32>
    %203 = arith.addf %201, %202 : vector<2x6x16x128xf32>
    %c0_270 = arith.constant 0 : index
    %c0_271 = arith.constant 0 : index
    %c2_272 = arith.constant 2 : index
    %c0_273 = arith.constant 0 : index
    %204 = vector.load %arg4[%c0_270, %c0_271, %c2_272, %c0_273] : memref<2x6x18x128xf32, #tpu.memory_space<vmem>>, vector<2x6x16x128xf32>
    %c1_i32_274 = arith.constant 1 : i32
    %205 = tpu.dynamic_rotate %204 by %c1_i32_274 dim 3 : vector<2x6x16x128xf32>, i32 -> vector<2x6x16x128xf32>
    %206 = arith.addf %198, %205 : vector<2x6x16x128xf32>
    %c127_i32_275 = arith.constant 127 : i32
    %207 = tpu.dynamic_rotate %204 by %c127_i32_275 dim 3 : vector<2x6x16x128xf32>, i32 -> vector<2x6x16x128xf32>
    %208 = arith.addf %206, %207 : vector<2x6x16x128xf32>
    %209 = arith.addf %203, %204 : vector<2x6x16x128xf32>
    %cst_276 = arith.constant 0.0517360233 : f32
    %210 = vector.broadcast %cst_276 : f32 to vector<2x6x16x128xf32>
    %211 = arith.mulf %210, %208 : vector<2x6x16x128xf32>
    %cst_277 = arith.constant 0.12794742 : f32
    %212 = vector.broadcast %cst_277 : f32 to vector<2x6x16x128xf32>
    %213 = arith.mulf %212, %209 : vector<2x6x16x128xf32>
    %214 = arith.addf %211, %213 : vector<2x6x16x128xf32>
    %cst_278 = arith.constant 0.281266183 : f32
    %215 = vector.broadcast %cst_278 : f32 to vector<2x6x16x128xf32>
    %216 = arith.mulf %215, %199 : vector<2x6x16x128xf32>
    %217 = arith.addf %214, %216 : vector<2x6x16x128xf32>
    %218 = vector.shape_cast %194 : vector<1x128xf32> to vector<1x1x1x128xf32>
    %219 = vector.broadcast %218 : vector<1x1x1x128xf32> to vector<2x6x16x128xf32>
    %220 = arith.mulf %217, %219 : vector<2x6x16x128xf32>
    %c0_279 = arith.constant 0 : index
    %c0_280 = arith.constant 0 : index
    %c1_281 = arith.constant 1 : index
    %c0_282 = arith.constant 0 : index
    %221 = vector.load %arg4[%c0_279, %c0_280, %c1_281, %c0_282] : memref<2x6x18x128xf32, #tpu.memory_space<vmem>>, vector<2x6x16x128xf32>
    tpu.vector_store %arg4[%c0_279, %c0_280, %c1_281, %c0_282], %220 {strides = array<i32>} : memref<2x6x18x128xf32, #tpu.memory_space<vmem>>, vector<2x6x16x128xf32>,
    %c0_283 = arith.constant 0 : index
    %c0_284 = arith.constant 0 : index
    %c0_285 = arith.constant 0 : index
    %c0_286 = arith.constant 0 : index
    %222 = vector.load %arg4[%c0_283, %c0_284, %c0_285, %c0_286] : memref<2x6x18x128xf32, #tpu.memory_space<vmem>>, vector<2x6x16x128xf32>
    %c1_i32_287 = arith.constant 1 : i32
    %223 = tpu.dynamic_rotate %222 by %c1_i32_287 dim 3 : vector<2x6x16x128xf32>, i32 -> vector<2x6x16x128xf32>
    %c127_i32_288 = arith.constant 127 : i32
    %224 = tpu.dynamic_rotate %222 by %c127_i32_288 dim 3 : vector<2x6x16x128xf32>, i32 -> vector<2x6x16x128xf32>
    %225 = arith.addf %223, %224 : vector<2x6x16x128xf32>
    %c0_289 = arith.constant 0 : index
    %c0_290 = arith.constant 0 : index
    %c1_291 = arith.constant 1 : index
    %c0_292 = arith.constant 0 : index
    %226 = vector.load %arg4[%c0_289, %c0_290, %c1_291, %c0_292] : memref<2x6x18x128xf32, #tpu.memory_space<vmem>>, vector<2x6x16x128xf32>
    %c1_i32_293 = arith.constant 1 : i32
    %227 = tpu.dynamic_rotate %226 by %c1_i32_293 dim 3 : vector<2x6x16x128xf32>, i32 -> vector<2x6x16x128xf32>
    %228 = arith.addf %222, %227 : vector<2x6x16x128xf32>
    %c127_i32_294 = arith.constant 127 : i32
    %229 = tpu.dynamic_rotate %226 by %c127_i32_294 dim 3 : vector<2x6x16x128xf32>, i32 -> vector<2x6x16x128xf32>
    %230 = arith.addf %228, %229 : vector<2x6x16x128xf32>
    %c0_295 = arith.constant 0 : index
    %c0_296 = arith.constant 0 : index
    %c2_297 = arith.constant 2 : index
    %c0_298 = arith.constant 0 : index
    %231 = vector.load %arg4[%c0_295, %c0_296, %c2_297, %c0_298] : memref<2x6x18x128xf32, #tpu.memory_space<vmem>>, vector<2x6x16x128xf32>
    %c1_i32_299 = arith.constant 1 : i32
    %232 = tpu.dynamic_rotate %231 by %c1_i32_299 dim 3 : vector<2x6x16x128xf32>, i32 -> vector<2x6x16x128xf32>
    %233 = arith.addf %225, %232 : vector<2x6x16x128xf32>
    %c127_i32_300 = arith.constant 127 : i32
    %234 = tpu.dynamic_rotate %231 by %c127_i32_300 dim 3 : vector<2x6x16x128xf32>, i32 -> vector<2x6x16x128xf32>
    %235 = arith.addf %233, %234 : vector<2x6x16x128xf32>
    %236 = arith.addf %230, %231 : vector<2x6x16x128xf32>
    %cst_301 = arith.constant 0.0517360233 : f32
    %237 = vector.broadcast %cst_301 : f32 to vector<2x6x16x128xf32>
    %238 = arith.mulf %237, %235 : vector<2x6x16x128xf32>
    %cst_302 = arith.constant 0.12794742 : f32
    %239 = vector.broadcast %cst_302 : f32 to vector<2x6x16x128xf32>
    %240 = arith.mulf %239, %236 : vector<2x6x16x128xf32>
    %241 = arith.addf %238, %240 : vector<2x6x16x128xf32>
    %cst_303 = arith.constant 0.281266183 : f32
    %242 = vector.broadcast %cst_303 : f32 to vector<2x6x16x128xf32>
    %243 = arith.mulf %242, %226 : vector<2x6x16x128xf32>
    %244 = arith.addf %241, %243 : vector<2x6x16x128xf32>
    %cst_304 = arith.constant 5.000000e-01 : f32
    %245 = vector.broadcast %cst_304 : f32 to vector<2x6x16x128xf32>
    %246 = arith.addf %244, %245 : vector<2x6x16x128xf32>
    %c0_305 = arith.constant 0 : index
    %c0_306 = arith.constant 0 : index
    %c0_307 = arith.constant 0 : index
    %c0_308 = arith.constant 0 : index
    %247 = vector.load %arg3[%c0_305, %c0_306, %c0_307, %c0_308] : memref<2x6x16x128xf32, #tpu.memory_space<vmem>>, vector<2x6x16x128xf32>
    tpu.vector_store %arg3[%c0_305, %c0_306, %c0_307, %c0_308], %246 {strides = array<i32>} : memref<2x6x16x128xf32, #tpu.memory_space<vmem>>, vector<2x6x16x128xf32>,
    return
  }
  func.func @transform_0(%arg0: i32) -> (i32, i32) {
    %c0_i32 = arith.constant 0 : i32
    %c0_i32_0 = arith.constant 0 : i32
    %c0_i32_1 = arith.constant 0 : i32
    return %c0_i32, %c0_i32_0 : i32, i32
  }
  func.func @transform_1(%arg0: i32) -> (i32, i32, i32, i32, i32) {
    %c0_i32 = arith.constant 0 : i32
    %c0_i32_0 = arith.constant 0 : i32
    %c0_i32_1 = arith.constant 0 : i32
    %c0_i32_2 = arith.constant 0 : i32
    %c0_i32_3 = arith.constant 0 : i32
    return %arg0, %c0_i32, %c0_i32_0, %c0_i32_1, %c0_i32_2 : i32, i32, i32, i32, i32
  }
  func.func @transform_2(%arg0: i32) -> (i32, i32, i32, i32) {
    %c0_i32 = arith.constant 0 : i32
    %c0_i32_0 = arith.constant 0 : i32
    %c0_i32_1 = arith.constant 0 : i32
    %c0_i32_2 = arith.constant 0 : i32
    return %arg0, %c0_i32, %c0_i32_0, %c0_i32_1 : i32, i32, i32, i32
  }
}

</mosaic_0001>

<llo_original>
// kernel: _lambda_.1
$region0: #{_lambda_.1}
  #allocation0 [shape = 'u32[]', space=smem, size = 0x4, offset = 0x4, fixed_abs, tag = 'smem constant byte address 0x4 - core index']
  #allocation1 [shape = 'u32[144,128]{1,0:T(1,128)}', space=vmem, size = 0x12000, scoped, tag = 'internal scratch']
  #allocation2 [shape = 'f32[2,6,18,128]{3,2,1,0:T(8,128)}', space=vmem, size = 0x24000, scoped, tag = 'scratch operand']
  %s0 = inlined_call_operand.hbm [shape: f32[1,128], index: 0, kind: input, shape index: {}]
  %s1 = inlined_call_operand.hbm [shape: f32[2,8,3,16,128], index: 1, kind: input, shape index: {}]
  %s2 = inlined_call_operand.hbm [shape: f32[2,6,16,128], index: 2, kind: output, shape index: {}]
  %s3 = sld [smem:[#allocation0]]
  $region26: #{_lambda_.1} parent=0
    _
  %s5 = ssub.s32 1, %s3
  %s6 = scalar_select 0, %s5, %s3
  $region1: #{_lambda_.1} parent=0
    #allocation3 [shape = 'u8[512]{0}', space=vmem, size = 0x400, scoped, tag = 'input window, operand 0, single buffered']
    #allocation4 [shape = 's32[1]{0}', space=sflag, size = 0x4, scoped, tag = 'scoped memory for _lambda_.1']
    #allocation5 [shape = 's32[1]{0}', space=sflag, size = 0x4, scoped, tag = 'scoped memory for _lambda_.1']
    #allocation6 [shape = 'u8[393216]{0}', space=vmem, size = 0x60000, scoped, tag = 'input window, operand 1, single buffered']
    #allocation7 [shape = 's32[1]{0}', space=sflag, size = 0x4, scoped, tag = 'scoped memory for _lambda_.1']
    #allocation8 [shape = 'u8[98304]{0}', space=vmem, size = 0x18000, scoped, tag = 'output window, operand 0, single buffered']
    %7 = vsyncpa [#allocation4], 0
    %8 = vsyncpa [#allocation7], 0
    %9 = vsyncpa [#allocation5], 0
    // Predicated region
    $region2: #{_lambda_.1} parent=1 // pred_check
      _
    $region3: #{_lambda_.1} parent=1 // pred_check_branch
      %11 = sbr.rel (0) target = $region5
    $region4: #{_lambda_.1} parent=1 // pred_region
      %s13 = ssub.s32 16, 16
      %14 = vsyncadd [#allocation4], %s13
      %s16 = sshll.u32 [#allocation3], 4
      %s17 = int_to_ptr.vmem [resolvable:$true] %s16
      %19 = dma.hbm_to_vmem [thread:$0]  %s0, 16, %s17, [#allocation4]
    $region5: #{_lambda_.1} parent=1 // pred_fallthru
      _
    // Predicated region
    $region6: #{_lambda_.1} parent=1 // pred_check
      _
    $region7: #{_lambda_.1} parent=1 // pred_check_branch
      %21 = sbr.rel (0) target = $region9
    $region8: #{_lambda_.1} parent=1 // pred_region
      %s23 = ssub.s32 12288, 12288
      %24 = vsyncadd [#allocation7], %s23
      %s25 = sshll.u32 [#allocation6], 4
      %s26 = int_to_ptr.vmem [resolvable:$true] %s25
      %31 = dma.hbm_to_vmem [thread:$0]  %s1, 12288, %s26, [#allocation7], 128, 128, 8
    $region9: #{_lambda_.1} parent=1 // pred_fallthru
      _
    // Predicated region
    $region10: #{_lambda_.1} parent=1 // pred_check
      _
    $region11: #{_lambda_.1} parent=1 // pred_check_branch
      %33 = sbr.rel (0) target = $region13
    $region12: #{_lambda_.1} parent=1 // pred_region
      %34 = dma.done [#allocation4], 16
    $region13: #{_lambda_.1} parent=1 // pred_fallthru
      _
    // Predicated region
    $region14: #{_lambda_.1} parent=1 // pred_check
      _
    $region15: #{_lambda_.1} parent=1 // pred_check_branch
      %36 = sbr.rel (0) target = $region17
    $region16: #{_lambda_.1} parent=1 // pred_region
      %37 = dma.done [#allocation7], 12288
    $region17: #{_lambda_.1} parent=1 // pred_fallthru
      _
    %v38 = vld [vmem:[#allocation6] sm:$0xff]
    %v39 = vld [vmem:[#allocation6 + $0x8] sm:$0xff]
    %v40 = vld [vmem:[#allocation6 + $0x180] sm:$0xff]
    %v41 = vld [vmem:[#allocation6 + $0x188] sm:$0xff]
    %s42 = scalar_lea.vmem [#allocation6], 16
    %v43 = vld [vmem:[%s42] sm:$0xff]
    %v44 = vld [vmem:[%s42 + $0x8] sm:$0xff]
    %v45 = vld [vmem:[%s42 + $0x180] sm:$0xff]
    %v46 = vld [vmem:[%s42 + $0x188] sm:$0xff]
    %v47 = vadd.f32 %v38, %v43
    %v48 = vadd.f32 %v39, %v44
    %v49 = vadd.f32 %v40, %v45
    %v50 = vadd.f32 %v41, %v46
    %s51 = scalar_lea.vmem [#allocation6], 32
    %v52 = vld [vmem:[%s51] sm:$0xff]
    %v53 = vld [vmem:[%s51 + $0x8] sm:$0xff]
    %v54 = vld [vmem:[%s51 + $0x180] sm:$0xff]
    %v55 = vld [vmem:[%s51 + $0x188] sm:$0xff]
    %v56 = vadd.f32 %v47, %v52
    %v57 = vadd.f32 %v48, %v53
    %v58 = vadd.f32 %v49, %v54
    %v59 = vadd.f32 %v50, %v55
    %v60 = vmul.f32 %v56, -0.16666667
    %v61 = vmul.f32 %v57, -0.16666667
    %v62 = vmul.f32 %v58, -0.16666667
    %v63 = vmul.f32 %v59, -0.16666667
    %64 = vst [vmem:[#allocation2 + $0x1] sm:$0xff] %v60
    %65 = vst [vmem:[#allocation2 + $0x9] sm:$0xff] %v61
    %66 = vst [vmem:[#allocation2 + $0x91] sm:$0xff] %v62
    %67 = vst [vmem:[#allocation2 + $0x99] sm:$0xff] %v63
    %s68 = scalar_lea.vmem [#allocation6], 48
    %v69 = vld [vmem:[%s68] sm:$0xff]
    %v70 = vld [vmem:[%s68 + $0x8] sm:$0xff]
    %v71 = vld [vmem:[%s68 + $0x180] sm:$0xff]
    %v72 = vld [vmem:[%s68 + $0x188] sm:$0xff]
    %s73 = scalar_lea.vmem [#allocation6], 64
    %v74 = vld [vmem:[%s73] sm:$0xff]
    %v75 = vld [vmem:[%s73 + $0x8] sm:$0xff]
    %v76 = vld [vmem:[%s73 + $0x180] sm:$0xff]
    %v77 = vld [vmem:[%s73 + $0x188] sm:$0xff]
    %v78 = vadd.f32 %v69, %v74
    %v79 = vadd.f32 %v70, %v75
    %v80 = vadd.f32 %v71, %v76
    %v81 = vadd.f32 %v72, %v77
    %s82 = scalar_lea.vmem [#allocation6], 80
    %v83 = vld [vmem:[%s82] sm:$0xff]
    %v84 = vld [vmem:[%s82 + $0x8] sm:$0xff]
    %v85 = vld [vmem:[%s82 + $0x180] sm:$0xff]
    %v86 = vld [vmem:[%s82 + $0x188] sm:$0xff]
    %v87 = vadd.f32 %v78, %v83
    %v88 = vadd.f32 %v79, %v84
    %v89 = vadd.f32 %v80, %v85
    %v90 = vadd.f32 %v81, %v86
    %v91 = vmul.f32 %v87, 0.33333334
    %v92 = vmul.f32 %v88, 0.33333334
    %v93 = vmul.f32 %v89, 0.33333334
    %v94 = vmul.f32 %v90, 0.33333334
    %v95 = vld [vmem:[#allocation2 + $0x1] sm:$0xff]
    %v96 = vld [vmem:[#allocation2 + $0x9] sm:$0xff]
    %v97 = vld [vmem:[#allocation2 + $0x91] sm:$0xff]
    %v98 = vld [vmem:[#allocation2 + $0x99] sm:$0xff]
    %v99 = vadd.f32 %v95, %v91
    %v100 = vadd.f32 %v96, %v92
    %v101 = vadd.f32 %v97, %v93
    %v102 = vadd.f32 %v98, %v94
    %103 = vst [vmem:[#allocation2 + $0x1] sm:$0xff] %v99
    %104 = vst [vmem:[#allocation2 + $0x9] sm:$0xff] %v100
    %105 = vst [vmem:[#allocation2 + $0x91] sm:$0xff] %v101
    %106 = vst [vmem:[#allocation2 + $0x99] sm:$0xff] %v102
    %v107 = vmul.f32 %v87, -0.16666667
    %v108 = vmul.f32 %v88, -0.16666667
    %v109 = vmul.f32 %v89, -0.16666667
    %v110 = vmul.f32 %v90, -0.16666667
    %s111 = scalar_lea.vmem [#allocation2], 24
    %112 = vst [vmem:[%s111 + $0x1] sm:$0xff] %v107
    %113 = vst [vmem:[%s111 + $0x9] sm:$0xff] %v108
    %114 = vst [vmem:[%s111 + $0x91] sm:$0xff] %v109
    %115 = vst [vmem:[%s111 + $0x99] sm:$0xff] %v110
    %s116 = scalar_lea.vmem [#allocation6], 96
    %v117 = vld [vmem:[%s116] sm:$0xff]
    %v118 = vld [vmem:[%s116 + $0x8] sm:$0xff]
    %v119 = vld [vmem:[%s116 + $0x180] sm:$0xff]
    %v120 = vld [vmem:[%s116 + $0x188] sm:$0xff]
    %s121 = scalar_lea.vmem [#allocation6], 112
    %v122 = vld [vmem:[%s121] sm:$0xff]
    %v123 = vld [vmem:[%s121 + $0x8] sm:$0xff]
    %v124 = vld [vmem:[%s121 + $0x180] sm:$0xff]
    %v125 = vld [vmem:[%s121 + $0x188] sm:$0xff]
    %v126 = vadd.f32 %v117, %v122
    %v127 = vadd.f32 %v118, %v123
    %v128 = vadd.f32 %v119, %v124
    %v129 = vadd.f32 %v120, %v125
    %s130 = scalar_lea.vmem [#allocation6], 128
    %v131 = vld [vmem:[%s130] sm:$0xff]
    %v132 = vld [vmem:[%s130 + $0x8] sm:$0xff]
    %v133 = vld [vmem:[%s130 + $0x180] sm:$0xff]
    %v134 = vld [vmem:[%s130 + $0x188] sm:$0xff]
    %v135 = vadd.f32 %v126, %v131
    %v136 = vadd.f32 %v127, %v132
    %v137 = vadd.f32 %v128, %v133
    %v138 = vadd.f32 %v129, %v134
    %v139 = vmul.f32 %v135, -0.16666667
    %v140 = vmul.f32 %v136, -0.16666667
    %v141 = vmul.f32 %v137, -0.16666667
    %v142 = vmul.f32 %v138, -0.16666667
    %v143 = vld [vmem:[#allocation2 + $0x1] sm:$0xff]
    %v144 = vld [vmem:[#allocation2 + $0x9] sm:$0xff]
    %v145 = vld [vmem:[#allocation2 + $0x91] sm:$0xff]
    %v146 = vld [vmem:[#allocation2 + $0x99] sm:$0xff]
    %v147 = vadd.f32 %v143, %v139
    %v148 = vadd.f32 %v144, %v140
    %v149 = vadd.f32 %v145, %v141
    %v150 = vadd.f32 %v146, %v142
    %151 = vst [vmem:[#allocation2 + $0x1] sm:$0xff] %v147
    %152 = vst [vmem:[#allocation2 + $0x9] sm:$0xff] %v148
    %153 = vst [vmem:[#allocation2 + $0x91] sm:$0xff] %v149
    %154 = vst [vmem:[#allocation2 + $0x99] sm:$0xff] %v150
    %v155 = vmul.f32 %v135, 0.33333334
    %v156 = vmul.f32 %v136, 0.33333334
    %v157 = vmul.f32 %v137, 0.33333334
    %v158 = vmul.f32 %v138, 0.33333334
    %v159 = vld [vmem:[%s111 + $0x1] sm:$0xff]
    %v160 = vld [vmem:[%s111 + $0x9] sm:$0xff]
    %v161 = vld [vmem:[%s111 + $0x91] sm:$0xff]
    %v162 = vld [vmem:[%s111 + $0x99] sm:$0xff]
    %v163 = vadd.f32 %v159, %v155
    %v164 = vadd.f32 %v160, %v156
    %v165 = vadd.f32 %v161, %v157
    %v166 = vadd.f32 %v162, %v158
    %167 = vst [vmem:[%s111 + $0x1] sm:$0xff] %v163
    %168 = vst [vmem:[%s111 + $0x9] sm:$0xff] %v164
    %169 = vst [vmem:[%s111 + $0x91] sm:$0xff] %v165
    %170 = vst [vmem:[%s111 + $0x99] sm:$0xff] %v166
    %s171 = scalar_lea.vmem [#allocation2], 48
    %172 = vst [vmem:[%s171 + $0x1] sm:$0xff] %v139
    %173 = vst [vmem:[%s171 + $0x9] sm:$0xff] %v140
    %174 = vst [vmem:[%s171 + $0x91] sm:$0xff] %v141
    %175 = vst [vmem:[%s171 + $0x99] sm:$0xff] %v142
    %s176 = scalar_lea.vmem [#allocation6], 144
    %v177 = vld [vmem:[%s176] sm:$0xff]
    %v178 = vld [vmem:[%s176 + $0x8] sm:$0xff]
    %v179 = vld [vmem:[%s176 + $0x180] sm:$0xff]
    %v180 = vld [vmem:[%s176 + $0x188] sm:$0xff]
    %s181 = scalar_lea.vmem [#allocation6], 160
    %v182 = vld [vmem:[%s181] sm:$0xff]
    %v183 = vld [vmem:[%s181 + $0x8] sm:$0xff]
    %v184 = vld [vmem:[%s181 + $0x180] sm:$0xff]
    %v185 = vld [vmem:[%s181 + $0x188] sm:$0xff]
    %v186 = vadd.f32 %v177, %v182
    %v187 = vadd.f32 %v178, %v183
    %v188 = vadd.f32 %v179, %v184
    %v189 = vadd.f32 %v180, %v185
    %s190 = scalar_lea.vmem [#allocation6], 176
    %v191 = vld [vmem:[%s190] sm:$0xff]
    %v192 = vld [vmem:[%s190 + $0x8] sm:$0xff]
    %v193 = vld [vmem:[%s190 + $0x180] sm:$0xff]
    %v194 = vld [vmem:[%s190 + $0x188] sm:$0xff]
    %v195 = vadd.f32 %v186, %v191
    %v196 = vadd.f32 %v187, %v192
    %v197 = vadd.f32 %v188, %v193
    %v198 = vadd.f32 %v189, %v194
    %v199 = vmul.f32 %v195, -0.16666667
    %v200 = vmul.f32 %v196, -0.16666667
    %v201 = vmul.f32 %v197, -0.16666667
    %v202 = vmul.f32 %v198, -0.16666667
    %v203 = vld [vmem:[%s111 + $0x1] sm:$0xff]
    %v204 = vld [vmem:[%s111 + $0x9] sm:$0xff]
    %v205 = vld [vmem:[%s111 + $0x91] sm:$0xff]
    %v206 = vld [vmem:[%s111 + $0x99] sm:$0xff]
    %v207 = vadd.f32 %v203, %v199
    %v208 = vadd.f32 %v204, %v200
    %v209 = vadd.f32 %v205, %v201
    %v210 = vadd.f32 %v206, %v202
    %211 = vst [vmem:[%s111 + $0x1] sm:$0xff] %v207
    %212 = vst [vmem:[%s111 + $0x9] sm:$0xff] %v208
    %213 = vst [vmem:[%s111 + $0x91] sm:$0xff] %v209
    %214 = vst [vmem:[%s111 + $0x99] sm:$0xff] %v210
    %v215 = vmul.f32 %v195, 0.33333334
    %v216 = vmul.f32 %v196, 0.33333334
    %v217 = vmul.f32 %v197, 0.33333334
    %v218 = vmul.f32 %v198, 0.33333334
    %v219 = vld [vmem:[%s171 + $0x1] sm:$0xff]
    %v220 = vld [vmem:[%s171 + $0x9] sm:$0xff]
    %v221 = vld [vmem:[%s171 + $0x91] sm:$0xff]
    %v222 = vld [vmem:[%s171 + $0x99] sm:$0xff]
    %v223 = vadd.f32 %v219, %v215
    %v224 = vadd.f32 %v220, %v216
    %v225 = vadd.f32 %v221, %v217
    %v226 = vadd.f32 %v222, %v218
    %227 = vst [vmem:[%s171 + $0x1] sm:$0xff] %v223
    %228 = vst [vmem:[%s171 + $0x9] sm:$0xff] %v224
    %229 = vst [vmem:[%s171 + $0x91] sm:$0xff] %v225
    %230 = vst [vmem:[%s171 + $0x99] sm:$0xff] %v226
    %s231 = scalar_lea.vmem [#allocation2], 72
    %232 = vst [vmem:[%s231 + $0x1] sm:$0xff] %v199
    %233 = vst [vmem:[%s231 + $0x9] sm:$0xff] %v200
    %234 = vst [vmem:[%s231 + $0x91] sm:$0xff] %v201
    %235 = vst [vmem:[%s231 + $0x99] sm:$0xff] %v202
    %s236 = scalar_lea.vmem [#allocation6], 192
    %v237 = vld [vmem:[%s236] sm:$0xff]
    %v238 = vld [vmem:[%s236 + $0x8] sm:$0xff]
    %v239 = vld [vmem:[%s236 + $0x180] sm:$0xff]
    %v240 = vld [vmem:[%s236 + $0x188] sm:$0xff]
    %s241 = scalar_lea.vmem [#allocation6], 208
    %v242 = vld [vmem:[%s241] sm:$0xff]
    %v243 = vld [vmem:[%s241 + $0x8] sm:$0xff]
    %v244 = vld [vmem:[%s241 + $0x180] sm:$0xff]
    %v245 = vld [vmem:[%s241 + $0x188] sm:$0xff]
    %v246 = vadd.f32 %v237, %v242
    %v247 = vadd.f32 %v238, %v243
    %v248 = vadd.f32 %v239, %v244
    %v249 = vadd.f32 %v240, %v245
    %s250 = scalar_lea.vmem [#allocation6], 224
    %v251 = vld [vmem:[%s250] sm:$0xff]
    %v252 = vld [vmem:[%s250 + $0x8] sm:$0xff]
    %v253 = vld [vmem:[%s250 + $0x180] sm:$0xff]
    %v254 = vld [vmem:[%s250 + $0x188] sm:$0xff]
    %v255 = vadd.f32 %v246, %v251
    %v256 = vadd.f32 %v247, %v252
    %v257 = vadd.f32 %v248, %v253
    %v258 = vadd.f32 %v249, %v254
    %v259 = vmul.f32 %v255, -0.16666667
    %v260 = vmul.f32 %v256, -0.16666667
    %v261 = vmul.f32 %v257, -0.16666667
    %v262 = vmul.f32 %v258, -0.16666667
    %v263 = vld [vmem:[%s171 + $0x1] sm:$0xff]
    %v264 = vld [vmem:[%s171 + $0x9] sm:$0xff]
    %v265 = vld [vmem:[%s171 + $0x91] sm:$0xff]
    %v266 = vld [vmem:[%s171 + $0x99] sm:$0xff]
    %v267 = vadd.f32 %v263, %v259
    %v268 = vadd.f32 %v264, %v260
    %v269 = vadd.f32 %v265, %v261
    %v270 = vadd.f32 %v266, %v262
    %271 = vst [vmem:[%s171 + $0x1] sm:$0xff] %v267
    %272 = vst [vmem:[%s171 + $0x9] sm:$0xff] %v268
    %273 = vst [vmem:[%s171 + $0x91] sm:$0xff] %v269
    %274 = vst [vmem:[%s171 + $0x99] sm:$0xff] %v270
    %v275 = vmul.f32 %v255, 0.33333334
    %v276 = vmul.f32 %v256, 0.33333334
    %v277 = vmul.f32 %v257, 0.33333334
    %v278 = vmul.f32 %v258, 0.33333334
    %v279 = vld [vmem:[%s231 + $0x1] sm:$0xff]
    %v280 = vld [vmem:[%s231 + $0x9] sm:$0xff]
    %v281 = vld [vmem:[%s231 + $0x91] sm:$0xff]
    %v282 = vld [vmem:[%s231 + $0x99] sm:$0xff]
    %v283 = vadd.f32 %v279, %v275
    %v284 = vadd.f32 %v280, %v276
    %v285 = vadd.f32 %v281, %v277
    %v286 = vadd.f32 %v282, %v278
    %287 = vst [vmem:[%s231 + $0x1] sm:$0xff] %v283
    %288 = vst [vmem:[%s231 + $0x9] sm:$0xff] %v284
    %289 = vst [vmem:[%s231 + $0x91] sm:$0xff] %v285
    %290 = vst [vmem:[%s231 + $0x99] sm:$0xff] %v286
    %s291 = scalar_lea.vmem [#allocation2], 96
    %292 = vst [vmem:[%s291 + $0x1] sm:$0xff] %v259
    %293 = vst [vmem:[%s291 + $0x9] sm:$0xff] %v260
    %294 = vst [vmem:[%s291 + $0x91] sm:$0xff] %v261
    %295 = vst [vmem:[%s291 + $0x99] sm:$0xff] %v262
    %s296 = scalar_lea.vmem [#allocation6], 240
    %v297 = vld [vmem:[%s296] sm:$0xff]
    %v298 = vld [vmem:[%s296 + $0x8] sm:$0xff]
    %v299 = vld [vmem:[%s296 + $0x180] sm:$0xff]
    %v300 = vld [vmem:[%s296 + $0x188] sm:$0xff]
    %s301 = scalar_lea.vmem [#allocation6], 256
    %v302 = vld [vmem:[%s301] sm:$0xff]
    %v303 = vld [vmem:[%s301 + $0x8] sm:$0xff]
    %v304 = vld [vmem:[%s301 + $0x180] sm:$0xff]
    %v305 = vld [vmem:[%s301 + $0x188] sm:$0xff]
    %v306 = vadd.f32 %v297, %v302
    %v307 = vadd.f32 %v298, %v303
    %v308 = vadd.f32 %v299, %v304
    %v309 = vadd.f32 %v300, %v305
    %s310 = scalar_lea.vmem [#allocation6], 272
    %v311 = vld [vmem:[%s310] sm:$0xff]
    %v312 = vld [vmem:[%s310 + $0x8] sm:$0xff]
    %v313 = vld [vmem:[%s310 + $0x180] sm:$0xff]
    %v314 = vld [vmem:[%s310 + $0x188] sm:$0xff]
    %v315 = vadd.f32 %v306, %v311
    %v316 = vadd.f32 %v307, %v312
    %v317 = vadd.f32 %v308, %v313
    %v318 = vadd.f32 %v309, %v314
    %v319 = vmul.f32 %v315, -0.16666667
    %v320 = vmul.f32 %v316, -0.16666667
    %v321 = vmul.f32 %v317, -0.16666667
    %v322 = vmul.f32 %v318, -0.16666667
    %v323 = vld [vmem:[%s231 + $0x1] sm:$0xff]
    %v324 = vld [vmem:[%s231 + $0x9] sm:$0xff]
    %v325 = vld [vmem:[%s231 + $0x91] sm:$0xff]
    %v326 = vld [vmem:[%s231 + $0x99] sm:$0xff]
    %v327 = vadd.f32 %v323, %v319
    %v328 = vadd.f32 %v324, %v320
    %v329 = vadd.f32 %v325, %v321
    %v330 = vadd.f32 %v326, %v322
    %331 = vst [vmem:[%s231 + $0x1] sm:$0xff] %v327
    %332 = vst [vmem:[%s231 + $0x9] sm:$0xff] %v328
    %333 = vst [vmem:[%s231 + $0x91] sm:$0xff] %v329
    %334 = vst [vmem:[%s231 + $0x99] sm:$0xff] %v330
    %v335 = vmul.f32 %v315, 0.33333334
    %v336 = vmul.f32 %v316, 0.33333334
    %v337 = vmul.f32 %v317, 0.33333334
    %v338 = vmul.f32 %v318, 0.33333334
    %v339 = vld [vmem:[%s291 + $0x1] sm:$0xff]
    %v340 = vld [vmem:[%s291 + $0x9] sm:$0xff]
    %v341 = vld [vmem:[%s291 + $0x91] sm:$0xff]
    %v342 = vld [vmem:[%s291 + $0x99] sm:$0xff]
    %v343 = vadd.f32 %v339, %v335
    %v344 = vadd.f32 %v340, %v336
    %v345 = vadd.f32 %v341, %v337
    %v346 = vadd.f32 %v342, %v338
    %347 = vst [vmem:[%s291 + $0x1] sm:$0xff] %v343
    %348 = vst [vmem:[%s291 + $0x9] sm:$0xff] %v344
    %349 = vst [vmem:[%s291 + $0x91] sm:$0xff] %v345
    %350 = vst [vmem:[%s291 + $0x99] sm:$0xff] %v346
    %s351 = scalar_lea.vmem [#allocation2], 120
    %352 = vst [vmem:[%s351 + $0x1] sm:$0xff] %v319
    %353 = vst [vmem:[%s351 + $0x9] sm:$0xff] %v320
    %354 = vst [vmem:[%s351 + $0x91] sm:$0xff] %v321
    %355 = vst [vmem:[%s351 + $0x99] sm:$0xff] %v322
    %s356 = scalar_lea.vmem [#allocation6], 288
    %v357 = vld [vmem:[%s356] sm:$0xff]
    %v358 = vld [vmem:[%s356 + $0x8] sm:$0xff]
    %v359 = vld [vmem:[%s356 + $0x180] sm:$0xff]
    %v360 = vld [vmem:[%s356 + $0x188] sm:$0xff]
    %s361 = scalar_lea.vmem [#allocation6], 304
    %v362 = vld [vmem:[%s361] sm:$0xff]
    %v363 = vld [vmem:[%s361 + $0x8] sm:$0xff]
    %v364 = vld [vmem:[%s361 + $0x180] sm:$0xff]
    %v365 = vld [vmem:[%s361 + $0x188] sm:$0xff]
    %v366 = vadd.f32 %v357, %v362
    %v367 = vadd.f32 %v358, %v363
    %v368 = vadd.f32 %v359, %v364
    %v369 = vadd.f32 %v360, %v365
    %s370 = scalar_lea.vmem [#allocation6], 320
    %v371 = vld [vmem:[%s370] sm:$0xff]
    %v372 = vld [vmem:[%s370 + $0x8] sm:$0xff]
    %v373 = vld [vmem:[%s370 + $0x180] sm:$0xff]
    %v374 = vld [vmem:[%s370 + $0x188] sm:$0xff]
    %v375 = vadd.f32 %v366, %v371
    %v376 = vadd.f32 %v367, %v372
    %v377 = vadd.f32 %v368, %v373
    %v378 = vadd.f32 %v369, %v374
    %v379 = vmul.f32 %v375, -0.16666667
    %v380 = vmul.f32 %v376, -0.16666667
    %v381 = vmul.f32 %v377, -0.16666667
    %v382 = vmul.f32 %v378, -0.16666667
    %v383 = vld [vmem:[%s291 + $0x1] sm:$0xff]
    %v384 = vld [vmem:[%s291 + $0x9] sm:$0xff]
    %v385 = vld [vmem:[%s291 + $0x91] sm:$0xff]
    %v386 = vld [vmem:[%s291 + $0x99] sm:$0xff]
    %v387 = vadd.f32 %v383, %v379
    %v388 = vadd.f32 %v384, %v380
    %v389 = vadd.f32 %v385, %v381
    %v390 = vadd.f32 %v386, %v382
    %391 = vst [vmem:[%s291 + $0x1] sm:$0xff] %v387
    %392 = vst [vmem:[%s291 + $0x9] sm:$0xff] %v388
    %393 = vst [vmem:[%s291 + $0x91] sm:$0xff] %v389
    %394 = vst [vmem:[%s291 + $0x99] sm:$0xff] %v390
    %v395 = vmul.f32 %v375, 0.33333334
    %v396 = vmul.f32 %v376, 0.33333334
    %v397 = vmul.f32 %v377, 0.33333334
    %v398 = vmul.f32 %v378, 0.33333334
    %v399 = vld [vmem:[%s351 + $0x1] sm:$0xff]
    %v400 = vld [vmem:[%s351 + $0x9] sm:$0xff]
    %v401 = vld [vmem:[%s351 + $0x91] sm:$0xff]
    %v402 = vld [vmem:[%s351 + $0x99] sm:$0xff]
    %v403 = vadd.f32 %v399, %v395
    %v404 = vadd.f32 %v400, %v396
    %v405 = vadd.f32 %v401, %v397
    %v406 = vadd.f32 %v402, %v398
    %407 = vst [vmem:[%s351 + $0x1] sm:$0xff] %v403
    %408 = vst [vmem:[%s351 + $0x9] sm:$0xff] %v404
    %409 = vst [vmem:[%s351 + $0x91] sm:$0xff] %v405
    %410 = vst [vmem:[%s351 + $0x99] sm:$0xff] %v406
    %s411 = scalar_lea.vmem [#allocation6], 336
    %v412 = vld [vmem:[%s411] sm:$0xff]
    %v413 = vld [vmem:[%s411 + $0x8] sm:$0xff]
    %v414 = vld [vmem:[%s411 + $0x180] sm:$0xff]
    %v415 = vld [vmem:[%s411 + $0x188] sm:$0xff]
    %s416 = scalar_lea.vmem [#allocation6], 352
    %v417 = vld [vmem:[%s416] sm:$0xff]
    %v418 = vld [vmem:[%s416 + $0x8] sm:$0xff]
    %v419 = vld [vmem:[%s416 + $0x180] sm:$0xff]
    %v420 = vld [vmem:[%s416 + $0x188] sm:$0xff]
    %v421 = vadd.f32 %v412, %v417
    %v422 = vadd.f32 %v413, %v418
    %v423 = vadd.f32 %v414, %v419
    %v424 = vadd.f32 %v415, %v420
    %s425 = scalar_lea.vmem [#allocation6], 368
    %v426 = vld [vmem:[%s425] sm:$0xff]
    %v427 = vld [vmem:[%s425 + $0x8] sm:$0xff]
    %v428 = vld [vmem:[%s425 + $0x180] sm:$0xff]
    %v429 = vld [vmem:[%s425 + $0x188] sm:$0xff]
    %v430 = vadd.f32 %v421, %v426
    %v431 = vadd.f32 %v422, %v427
    %v432 = vadd.f32 %v423, %v428
    %v433 = vadd.f32 %v424, %v429
    %v434 = vmul.f32 %v430, -0.16666667
    %v435 = vmul.f32 %v431, -0.16666667
    %v436 = vmul.f32 %v432, -0.16666667
    %v437 = vmul.f32 %v433, -0.16666667
    %v438 = vld [vmem:[%s351 + $0x1] sm:$0xff]
    %v439 = vld [vmem:[%s351 + $0x9] sm:$0xff]
    %v440 = vld [vmem:[%s351 + $0x91] sm:$0xff]
    %v441 = vld [vmem:[%s351 + $0x99] sm:$0xff]
    %v442 = vadd.f32 %v438, %v434
    %v443 = vadd.f32 %v439, %v435
    %v444 = vadd.f32 %v440, %v436
    %v445 = vadd.f32 %v441, %v437
    %446 = vst [vmem:[%s351 + $0x1] sm:$0xff] %v442
    %447 = vst [vmem:[%s351 + $0x9] sm:$0xff] %v443
    %448 = vst [vmem:[%s351 + $0x91] sm:$0xff] %v444
    %449 = vst [vmem:[%s351 + $0x99] sm:$0xff] %v445
    %450 = vst [vmem:[#allocation2] sm:$0x1] 0.0
    %451 = vst [vmem:[#allocation2 + $0x18] sm:$0x1] 0.0
    %452 = vst [vmem:[#allocation2 + $0x30] sm:$0x1] 0.0
    %453 = vst [vmem:[#allocation2 + $0x48] sm:$0x1] 0.0
    %454 = vst [vmem:[#allocation2 + $0x60] sm:$0x1] 0.0
    %455 = vst [vmem:[#allocation2 + $0x78] sm:$0x1] 0.0
    %456 = vst [vmem:[#allocation2 + $0x90] sm:$0x1] 0.0
    %457 = vst [vmem:[#allocation2 + $0xa8] sm:$0x1] 0.0
    %458 = vst [vmem:[#allocation2 + $0xc0] sm:$0x1] 0.0
    %459 = vst [vmem:[#allocation2 + $0xd8] sm:$0x1] 0.0
    %460 = vst [vmem:[#allocation2 + $0xf0] sm:$0x1] 0.0
    %461 = vst [vmem:[#allocation2 + $0x108] sm:$0x1] 0.0
    %462 = vst [vmem:[#allocation2 + $0x11] sm:$0x1] 0.0
    %463 = vst [vmem:[#allocation2 + $0x29] sm:$0x1] 0.0
    %464 = vst [vmem:[#allocation2 + $0x41] sm:$0x1] 0.0
    %465 = vst [vmem:[#allocation2 + $0x59] sm:$0x1] 0.0
    %466 = vst [vmem:[#allocation2 + $0x71] sm:$0x1] 0.0
    %467 = vst [vmem:[#allocation2 + $0x89] sm:$0x1] 0.0
    %468 = vst [vmem:[#allocation2 + $0xa1] sm:$0x1] 0.0
    %469 = vst [vmem:[#allocation2 + $0xb9] sm:$0x1] 0.0
    %470 = vst [vmem:[#allocation2 + $0xd1] sm:$0x1] 0.0
    %471 = vst [vmem:[#allocation2 + $0xe9] sm:$0x1] 0.0
    %472 = vst [vmem:[#allocation2 + $0x101] sm:$0x1] 0.0
    %473 = vst [vmem:[#allocation2 + $0x119] sm:$0x1] 0.0
    %v474 = vld [vmem:[#allocation3] sm:$0x1]
    %v475 = vld [vmem:[#allocation2] sm:$0xff]
    %v476 = vld [vmem:[#allocation2 + $0x8] sm:$0xff]
    %v477 = vld [vmem:[#allocation2 + $0x18] sm:$0xff]
    %v478 = vld [vmem:[#allocation2 + $0x20] sm:$0xff]
    %v479 = vld [vmem:[#allocation2 + $0x30] sm:$0xff]
    %v480 = vld [vmem:[#allocation2 + $0x38] sm:$0xff]
    %v481 = vld [vmem:[#allocation2 + $0x48] sm:$0xff]
    %v482 = vld [vmem:[#allocation2 + $0x50] sm:$0xff]
    %v483 = vld [vmem:[#allocation2 + $0x60] sm:$0xff]
    %v484 = vld [vmem:[#allocation2 + $0x68] sm:$0xff]
    %v485 = vld [vmem:[#allocation2 + $0x78] sm:$0xff]
    %v486 = vld [vmem:[#allocation2 + $0x80] sm:$0xff]
    %v487 = vld [vmem:[#allocation2 + $0x90] sm:$0xff]
    %v488 = vld [vmem:[#allocation2 + $0x98] sm:$0xff]
    %v489 = vld [vmem:[#allocation2 + $0xa8] sm:$0xff]
    %v490 = vld [vmem:[#allocation2 + $0xb0] sm:$0xff]
    %v491 = vld [vmem:[#allocation2 + $0xc0] sm:$0xff]
    %v492 = vld [vmem:[#allocation2 + $0xc8] sm:$0xff]
    %v493 = vld [vmem:[#allocation2 + $0xd8] sm:$0xff]
    %v494 = vld [vmem:[#allocation2 + $0xe0] sm:$0xff]
    %v495 = vld [vmem:[#allocation2 + $0xf0] sm:$0xff]
    %v496 = vld [vmem:[#allocation2 + $0xf8] sm:$0xff]
    %v497 = vld [vmem:[#allocation2 + $0x108] sm:$0xff]
    %v498 = vld [vmem:[#allocation2 + $0x110] sm:$0xff]
    %499 = vrot.lane.b32.xlu0 %v475, 1
    %v500 = vpop.permute.xlu0 %499
    %501 = vrot.lane.b32.xlu0 %v476, 1
    %v502 = vpop.permute.xlu0 %501
    %503 = vrot.lane.b32.xlu0 %v477, 1
    %v504 = vpop.permute.xlu0 %503
    %505 = vrot.lane.b32.xlu0 %v478, 1
    %v506 = vpop.permute.xlu0 %505
    %507 = vrot.lane.b32.xlu0 %v479, 1
    %v508 = vpop.permute.xlu0 %507
    %509 = vrot.lane.b32.xlu0 %v480, 1
    %v510 = vpop.permute.xlu0 %509
    %511 = vrot.lane.b32.xlu0 %v481, 1
    %v512 = vpop.permute.xlu0 %511
    %513 = vrot.lane.b32.xlu0 %v482, 1
    %v514 = vpop.permute.xlu0 %513
    %515 = vrot.lane.b32.xlu0 %v483, 1
    %v516 = vpop.permute.xlu0 %515
    %517 = vrot.lane.b32.xlu0 %v484, 1
    %v518 = vpop.permute.xlu0 %517
    %519 = vrot.lane.b32.xlu0 %v485, 1
    %v520 = vpop.permute.xlu0 %519
    %521 = vrot.lane.b32.xlu0 %v486, 1
    %v522 = vpop.permute.xlu0 %521
    %523 = vrot.lane.b32.xlu0 %v487, 1
    %v524 = vpop.permute.xlu0 %523
    %525 = vrot.lane.b32.xlu0 %v488, 1
    %v526 = vpop.permute.xlu0 %525
    %527 = vrot.lane.b32.xlu0 %v489, 1
    %v528 = vpop.permute.xlu0 %527
    %529 = vrot.lane.b32.xlu0 %v490, 1
    %v530 = vpop.permute.xlu0 %529
    %531 = vrot.lane.b32.xlu0 %v491, 1
    %v532 = vpop.permute.xlu0 %531
    %533 = vrot.lane.b32.xlu0 %v492, 1
    %v534 = vpop.permute.xlu0 %533
    %535 = vrot.lane.b32.xlu0 %v493, 1
    %v536 = vpop.permute.xlu0 %535
    %537 = vrot.lane.b32.xlu0 %v494, 1
    %v538 = vpop.permute.xlu0 %537
    %539 = vrot.lane.b32.xlu0 %v495, 1
    %v540 = vpop.permute.xlu0 %539
    %541 = vrot.lane.b32.xlu0 %v496, 1
    %v542 = vpop.permute.xlu0 %541
    %543 = vrot.lane.b32.xlu0 %v497, 1
    %v544 = vpop.permute.xlu0 %543
    %545 = vrot.lane.b32.xlu0 %v498, 1
    %v546 = vpop.permute.xlu0 %545
    %547 = vrot.lane.b32.xlu0 %v475, 127
    %v548 = vpop.permute.xlu0 %547
    %549 = vrot.lane.b32.xlu0 %v476, 127
    %v550 = vpop.permute.xlu0 %549
    %551 = vrot.lane.b32.xlu0 %v477, 127
    %v552 = vpop.permute.xlu0 %551
    %553 = vrot.lane.b32.xlu0 %v478, 127
    %v554 = vpop.permute.xlu0 %553
    %555 = vrot.lane.b32.xlu0 %v479, 127
    %v556 = vpop.permute.xlu0 %555
    %557 = vrot.lane.b32.xlu0 %v480, 127
    %v558 = vpop.permute.xlu0 %557
    %559 = vrot.lane.b32.xlu0 %v481, 127
    %v560 = vpop.permute.xlu0 %559
    %561 = vrot.lane.b32.xlu0 %v482, 127
    %v562 = vpop.permute.xlu0 %561
    %563 = vrot.lane.b32.xlu0 %v483, 127
    %v564 = vpop.permute.xlu0 %563
    %565 = vrot.lane.b32.xlu0 %v484, 127
    %v566 = vpop.permute.xlu0 %565
    %567 = vrot.lane.b32.xlu0 %v485, 127
    %v568 = vpop.permute.xlu0 %567
    %569 = vrot.lane.b32.xlu0 %v486, 127
    %v570 = vpop.permute.xlu0 %569
    %571 = vrot.lane.b32.xlu0 %v487, 127
    %v572 = vpop.permute.xlu0 %571
    %573 = vrot.lane.b32.xlu0 %v488, 127
    %v574 = vpop.permute.xlu0 %573
    %575 = vrot.lane.b32.xlu0 %v489, 127
    %v576 = vpop.permute.xlu0 %575
    %577 = vrot.lane.b32.xlu0 %v490, 127
    %v578 = vpop.permute.xlu0 %577
    %579 = vrot.lane.b32.xlu0 %v491, 127
    %v580 = vpop.permute.xlu0 %579
    %581 = vrot.lane.b32.xlu0 %v492, 127
    %v582 = vpop.permute.xlu0 %581
    %583 = vrot.lane.b32.xlu0 %v493, 127
    %v584 = vpop.permute.xlu0 %583
    %585 = vrot.lane.b32.xlu0 %v494, 127
    %v586 = vpop.permute.xlu0 %585
    %587 = vrot.lane.b32.xlu0 %v495, 127
    %v588 = vpop.permute.xlu0 %587
    %589 = vrot.lane.b32.xlu0 %v496, 127
    %v590 = vpop.permute.xlu0 %589
    %591 = vrot.lane.b32.xlu0 %v497, 127
    %v592 = vpop.permute.xlu0 %591
    %593 = vrot.lane.b32.xlu0 %v498, 127
    %v594 = vpop.permute.xlu0 %593
    %v595 = vadd.f32 %v500, %v548
    %v596 = vadd.f32 %v502, %v550
    %v597 = vadd.f32 %v504, %v552
    %v598 = vadd.f32 %v506, %v554
    %v599 = vadd.f32 %v508, %v556
    %v600 = vadd.f32 %v510, %v558
    %v601 = vadd.f32 %v512, %v560
    %v602 = vadd.f32 %v514, %v562
    %v603 = vadd.f32 %v516, %v564
    %v604 = vadd.f32 %v518, %v566
    %v605 = vadd.f32 %v520, %v568
    %v606 = vadd.f32 %v522, %v570
    %v607 = vadd.f32 %v524, %v572
    %v608 = vadd.f32 %v526, %v574
    %v609 = vadd.f32 %v528, %v576
    %v610 = vadd.f32 %v530, %v578
    %v611 = vadd.f32 %v532, %v580
    %v612 = vadd.f32 %v534, %v582
    %v613 = vadd.f32 %v536, %v584
    %v614 = vadd.f32 %v538, %v586
    %v615 = vadd.f32 %v540, %v588
    %v616 = vadd.f32 %v542, %v590
    %v617 = vadd.f32 %v544, %v592
    %v618 = vadd.f32 %v546, %v594
    %v619 = vld [vmem:[#allocation2 + $0x1] sm:$0xff]
    %v620 = vld [vmem:[#allocation2 + $0x9] sm:$0xff]
    %v621 = vld [vmem:[#allocation2 + $0x19] sm:$0xff]
    %v622 = vld [vmem:[#allocation2 + $0x21] sm:$0xff]
    %v623 = vld [vmem:[#allocation2 + $0x31] sm:$0xff]
    %v624 = vld [vmem:[#allocation2 + $0x39] sm:$0xff]
    %v625 = vld [vmem:[#allocation2 + $0x49] sm:$0xff]
    %v626 = vld [vmem:[#allocation2 + $0x51] sm:$0xff]
    %v627 = vld [vmem:[#allocation2 + $0x61] sm:$0xff]
    %v628 = vld [vmem:[#allocation2 + $0x69] sm:$0xff]
    %v629 = vld [vmem:[#allocation2 + $0x79] sm:$0xff]
    %v630 = vld [vmem:[#allocation2 + $0x81] sm:$0xff]
    %v631 = vld [vmem:[#allocation2 + $0x91] sm:$0xff]
    %v632 = vld [vmem:[#allocation2 + $0x99] sm:$0xff]
    %v633 = vld [vmem:[#allocation2 + $0xa9] sm:$0xff]
    %v634 = vld [vmem:[#allocation2 + $0xb1] sm:$0xff]
    %v635 = vld [vmem:[#allocation2 + $0xc1] sm:$0xff]
    %v636 = vld [vmem:[#allocation2 + $0xc9] sm:$0xff]
    %v637 = vld [vmem:[#allocation2 + $0xd9] sm:$0xff]
    %v638 = vld [vmem:[#allocation2 + $0xe1] sm:$0xff]
    %v639 = vld [vmem:[#allocation2 + $0xf1] sm:$0xff]
    %v640 = vld [vmem:[#allocation2 + $0xf9] sm:$0xff]
    %v641 = vld [vmem:[#allocation2 + $0x109] sm:$0xff]
    %v642 = vld [vmem:[#allocation2 + $0x111] sm:$0xff]
    %643 = vrot.lane.b32.xlu0 %v619, 1
    %v644 = vpop.permute.xlu0 %643
    %645 = vrot.lane.b32.xlu0 %v620, 1
    %v646 = vpop.permute.xlu0 %645
    %647 = vrot.lane.b32.xlu0 %v621, 1
    %v648 = vpop.permute.xlu0 %647
    %649 = vrot.lane.b32.xlu0 %v622, 1
    %v650 = vpop.permute.xlu0 %649
    %651 = vrot.lane.b32.xlu0 %v623, 1
    %v652 = vpop.permute.xlu0 %651
    %653 = vrot.lane.b32.xlu0 %v624, 1
    %v654 = vpop.permute.xlu0 %653
    %655 = vrot.lane.b32.xlu0 %v625, 1
    %v656 = vpop.permute.xlu0 %655
    %657 = vrot.lane.b32.xlu0 %v626, 1
    %v658 = vpop.permute.xlu0 %657
    %659 = vrot.lane.b32.xlu0 %v627, 1
    %v660 = vpop.permute.xlu0 %659
    %661 = vrot.lane.b32.xlu0 %v628, 1
    %v662 = vpop.permute.xlu0 %661
    %663 = vrot.lane.b32.xlu0 %v629, 1
    %v664 = vpop.permute.xlu0 %663
    %665 = vrot.lane.b32.xlu0 %v630, 1
    %v666 = vpop.permute.xlu0 %665
    %667 = vrot.lane.b32.xlu0 %v631, 1
    %v668 = vpop.permute.xlu0 %667
    %669 = vrot.lane.b32.xlu0 %v632, 1
    %v670 = vpop.permute.xlu0 %669
    %671 = vrot.lane.b32.xlu0 %v633, 1
    %v672 = vpop.permute.xlu0 %671
    %673 = vrot.lane.b32.xlu0 %v634, 1
    %v674 = vpop.permute.xlu0 %673
    %675 = vrot.lane.b32.xlu0 %v635, 1
    %v676 = vpop.permute.xlu0 %675
    %677 = vrot.lane.b32.xlu0 %v636, 1
    %v678 = vpop.permute.xlu0 %677
    %679 = vrot.lane.b32.xlu0 %v637, 1
    %v680 = vpop.permute.xlu0 %679
    %681 = vrot.lane.b32.xlu0 %v638, 1
    %v682 = vpop.permute.xlu0 %681
    %683 = vrot.lane.b32.xlu0 %v639, 1
    %v684 = vpop.permute.xlu0 %683
    %685 = vrot.lane.b32.xlu0 %v640, 1
    %v686 = vpop.permute.xlu0 %685
    %687 = vrot.lane.b32.xlu0 %v641, 1
    %v688 = vpop.permute.xlu0 %687
    %689 = vrot.lane.b32.xlu0 %v642, 1
    %v690 = vpop.permute.xlu0 %689
    %v691 = vadd.f32 %v475, %v644
    %v692 = vadd.f32 %v476, %v646
    %v693 = vadd.f32 %v477, %v648
    %v694 = vadd.f32 %v478, %v650
    %v695 = vadd.f32 %v479, %v652
    %v696 = vadd.f32 %v480, %v654
    %v697 = vadd.f32 %v481, %v656
    %v698 = vadd.f32 %v482, %v658
    %v699 = vadd.f32 %v483, %v660
    %v700 = vadd.f32 %v484, %v662
    %v701 = vadd.f32 %v485, %v664
    %v702 = vadd.f32 %v486, %v666
    %v703 = vadd.f32 %v487, %v668
    %v704 = vadd.f32 %v488, %v670
    %v705 = vadd.f32 %v489, %v672
    %v706 = vadd.f32 %v490, %v674
    %v707 = vadd.f32 %v491, %v676
    %v708 = vadd.f32 %v492, %v678
    %v709 = vadd.f32 %v493, %v680
    %v710 = vadd.f32 %v494, %v682
    %v711 = vadd.f32 %v495, %v684
    %v712 = vadd.f32 %v496, %v686
    %v713 = vadd.f32 %v497, %v688
    %v714 = vadd.f32 %v498, %v690
    %715 = vrot.lane.b32.xlu0 %v619, 127
    %v716 = vpop.permute.xlu0 %715
    %717 = vrot.lane.b32.xlu0 %v620, 127
    %v718 = vpop.permute.xlu0 %717
    %719 = vrot.lane.b32.xlu0 %v621, 127
    %v720 = vpop.permute.xlu0 %719
    %721 = vrot.lane.b32.xlu0 %v622, 127
    %v722 = vpop.permute.xlu0 %721
    %723 = vrot.lane.b32.xlu0 %v623, 127
    %v724 = vpop.permute.xlu0 %723
    %725 = vrot.lane.b32.xlu0 %v624, 127
    %v726 = vpop.permute.xlu0 %725
    %727 = vrot.lane.b32.xlu0 %v625, 127
    %v728 = vpop.permute.xlu0 %727
    %729 = vrot.lane.b32.xlu0 %v626, 127
    %v730 = vpop.permute.xlu0 %729
    %731 = vrot.lane.b32.xlu0 %v627, 127
    %v732 = vpop.permute.xlu0 %731
    %733 = vrot.lane.b32.xlu0 %v628, 127
    %v734 = vpop.permute.xlu0 %733
    %735 = vrot.lane.b32.xlu0 %v629, 127
    %v736 = vpop.permute.xlu0 %735
    %737 = vrot.lane.b32.xlu0 %v630, 127
    %v738 = vpop.permute.xlu0 %737
    %739 = vrot.lane.b32.xlu0 %v631, 127
    %v740 = vpop.permute.xlu0 %739
    %741 = vrot.lane.b32.xlu0 %v632, 127
    %v742 = vpop.permute.xlu0 %741
    %743 = vrot.lane.b32.xlu0 %v633, 127
    %v744 = vpop.permute.xlu0 %743
    %745 = vrot.lane.b32.xlu0 %v634, 127
    %v746 = vpop.permute.xlu0 %745
    %747 = vrot.lane.b32.xlu0 %v635, 127
    %v748 = vpop.permute.xlu0 %747
    %749 = vrot.lane.b32.xlu0 %v636, 127
    %v750 = vpop.permute.xlu0 %749
    %751 = vrot.lane.b32.xlu0 %v637, 127
    %v752 = vpop.permute.xlu0 %751
    %753 = vrot.lane.b32.xlu0 %v638, 127
    %v754 = vpop.permute.xlu0 %753
    %755 = vrot.lane.b32.xlu0 %v639, 127
    %v756 = vpop.permute.xlu0 %755
    %757 = vrot.lane.b32.xlu0 %v640, 127
    %v758 = vpop.permute.xlu0 %757
    %759 = vrot.lane.b32.xlu0 %v641, 127
    %v760 = vpop.permute.xlu0 %759
    %761 = vrot.lane.b32.xlu0 %v642, 127
    %v762 = vpop.permute.xlu0 %761
    %v763 = vadd.f32 %v691, %v716
    %v764 = vadd.f32 %v692, %v718
    %v765 = vadd.f32 %v693, %v720
    %v766 = vadd.f32 %v694, %v722
    %v767 = vadd.f32 %v695, %v724
    %v768 = vadd.f32 %v696, %v726
    %v769 = vadd.f32 %v697, %v728
    %v770 = vadd.f32 %v698, %v730
    %v771 = vadd.f32 %v699, %v732
    %v772 = vadd.f32 %v700, %v734
    %v773 = vadd.f32 %v701, %v736
    %v774 = vadd.f32 %v702, %v738
    %v775 = vadd.f32 %v703, %v740
    %v776 = vadd.f32 %v704, %v742
    %v777 = vadd.f32 %v705, %v744
    %v778 = vadd.f32 %v706, %v746
    %v779 = vadd.f32 %v707, %v748
    %v780 = vadd.f32 %v708, %v750
    %v781 = vadd.f32 %v709, %v752
    %v782 = vadd.f32 %v710, %v754
    %v783 = vadd.f32 %v711, %v756
    %v784 = vadd.f32 %v712, %v758
    %v785 = vadd.f32 %v713, %v760
    %v786 = vadd.f32 %v714, %v762
    %v787 = vld [vmem:[#allocation2 + $0x2] sm:$0xff]
    %v788 = vld [vmem:[#allocation2 + $0xa] sm:$0xff]
    %v789 = vld [vmem:[#allocation2 + $0x1a] sm:$0xff]
    %v790 = vld [vmem:[#allocation2 + $0x22] sm:$0xff]
    %v791 = vld [vmem:[#allocation2 + $0x32] sm:$0xff]
    %v792 = vld [vmem:[#allocation2 + $0x3a] sm:$0xff]
    %v793 = vld [vmem:[#allocation2 + $0x4a] sm:$0xff]
    %v794 = vld [vmem:[#allocation2 + $0x52] sm:$0xff]
    %v795 = vld [vmem:[#allocation2 + $0x62] sm:$0xff]
    %v796 = vld [vmem:[#allocation2 + $0x6a] sm:$0xff]
    %v797 = vld [vmem:[#allocation2 + $0x7a] sm:$0xff]
    %v798 = vld [vmem:[#allocation2 + $0x82] sm:$0xff]
    %v799 = vld [vmem:[#allocation2 + $0x92] sm:$0xff]
    %v800 = vld [vmem:[#allocation2 + $0x9a] sm:$0xff]
    %v801 = vld [vmem:[#allocation2 + $0xaa] sm:$0xff]
    %v802 = vld [vmem:[#allocation2 + $0xb2] sm:$0xff]
    %v803 = vld [vmem:[#allocation2 + $0xc2] sm:$0xff]
    %v804 = vld [vmem:[#allocation2 + $0xca] sm:$0xff]
    %v805 = vld [vmem:[#allocation2 + $0xda] sm:$0xff]
    %v806 = vld [vmem:[#allocation2 + $0xe2] sm:$0xff]
    %v807 = vld [vmem:[#allocation2 + $0xf2] sm:$0xff]
    %v808 = vld [vmem:[#allocation2 + $0xfa] sm:$0xff]
    %v809 = vld [vmem:[#allocation2 + $0x10a] sm:$0xff]
    %v810 = vld [vmem:[#allocation2 + $0x112] sm:$0xff]
    %811 = vrot.lane.b32.xlu0 %v787, 1
    %v812 = vpop.permute.xlu0 %811
    %813 = vrot.lane.b32.xlu0 %v788, 1
    %v814 = vpop.permute.xlu0 %813
    %815 = vrot.lane.b32.xlu0 %v789, 1
    %v816 = vpop.permute.xlu0 %815
    %817 = vrot.lane.b32.xlu0 %v790, 1
    %v818 = vpop.permute.xlu0 %817
    %819 = vrot.lane.b32.xlu0 %v791, 1
    %v820 = vpop.permute.xlu0 %819
    %821 = vrot.lane.b32.xlu0 %v792, 1
    %v822 = vpop.permute.xlu0 %821
    %823 = vrot.lane.b32.xlu0 %v793, 1
    %v824 = vpop.permute.xlu0 %823
    %825 = vrot.lane.b32.xlu0 %v794, 1
    %v826 = vpop.permute.xlu0 %825
    %827 = vrot.lane.b32.xlu0 %v795, 1
    %v828 = vpop.permute.xlu0 %827
    %829 = vrot.lane.b32.xlu0 %v796, 1
    %v830 = vpop.permute.xlu0 %829
    %831 = vrot.lane.b32.xlu0 %v797, 1
    %v832 = vpop.permute.xlu0 %831
    %833 = vrot.lane.b32.xlu0 %v798, 1
    %v834 = vpop.permute.xlu0 %833
    %835 = vrot.lane.b32.xlu0 %v799, 1
    %v836 = vpop.permute.xlu0 %835
    %837 = vrot.lane.b32.xlu0 %v800, 1
    %v838 = vpop.permute.xlu0 %837
    %839 = vrot.lane.b32.xlu0 %v801, 1
    %v840 = vpop.permute.xlu0 %839
    %841 = vrot.lane.b32.xlu0 %v802, 1
    %v842 = vpop.permute.xlu0 %841
    %843 = vrot.lane.b32.xlu0 %v803, 1
    %v844 = vpop.permute.xlu0 %843
    %845 = vrot.lane.b32.xlu0 %v804, 1
    %v846 = vpop.permute.xlu0 %845
    %847 = vrot.lane.b32.xlu0 %v805, 1
    %v848 = vpop.permute.xlu0 %847
    %849 = vrot.lane.b32.xlu0 %v806, 1
    %v850 = vpop.permute.xlu0 %849
    %851 = vrot.lane.b32.xlu0 %v807, 1
    %v852 = vpop.permute.xlu0 %851
    %853 = vrot.lane.b32.xlu0 %v808, 1
    %v854 = vpop.permute.xlu0 %853
    %855 = vrot.lane.b32.xlu0 %v809, 1
    %v856 = vpop.permute.xlu0 %855
    %857 = vrot.lane.b32.xlu0 %v810, 1
    %v858 = vpop.permute.xlu0 %857
    %v859 = vadd.f32 %v595, %v812
    %v860 = vadd.f32 %v596, %v814
    %v861 = vadd.f32 %v597, %v816
    %v862 = vadd.f32 %v598, %v818
    %v863 = vadd.f32 %v599, %v820
    %v864 = vadd.f32 %v600, %v822
    %v865 = vadd.f32 %v601, %v824
    %v866 = vadd.f32 %v602, %v826
    %v867 = vadd.f32 %v603, %v828
    %v868 = vadd.f32 %v604, %v830
    %v869 = vadd.f32 %v605, %v832
    %v870 = vadd.f32 %v606, %v834
    %v871 = vadd.f32 %v607, %v836
    %v872 = vadd.f32 %v608, %v838
    %v873 = vadd.f32 %v609, %v840
    %v874 = vadd.f32 %v610, %v842
    %v875 = vadd.f32 %v611, %v844
    %v876 = vadd.f32 %v612, %v846
    %v877 = vadd.f32 %v613, %v848
    %v878 = vadd.f32 %v614, %v850
    %v879 = vadd.f32 %v615, %v852
    %v880 = vadd.f32 %v616, %v854
    %v881 = vadd.f32 %v617, %v856
    %v882 = vadd.f32 %v618, %v858
    %883 = vrot.lane.b32.xlu0 %v787, 127
    %v884 = vpop.permute.xlu0 %883
    %885 = vrot.lane.b32.xlu0 %v788, 127
    %v886 = vpop.permute.xlu0 %885
    %887 = vrot.lane.b32.xlu0 %v789, 127
    %v888 = vpop.permute.xlu0 %887
    %889 = vrot.lane.b32.xlu0 %v790, 127
    %v890 = vpop.permute.xlu0 %889
    %891 = vrot.lane.b32.xlu0 %v791, 127
    %v892 = vpop.permute.xlu0 %891
    %893 = vrot.lane.b32.xlu0 %v792, 127
    %v894 = vpop.permute.xlu0 %893
    %895 = vrot.lane.b32.xlu0 %v793, 127
    %v896 = vpop.permute.xlu0 %895
    %897 = vrot.lane.b32.xlu0 %v794, 127
    %v898 = vpop.permute.xlu0 %897
    %899 = vrot.lane.b32.xlu0 %v795, 127
    %v900 = vpop.permute.xlu0 %899
    %901 = vrot.lane.b32.xlu0 %v796, 127
    %v902 = vpop.permute.xlu0 %901
    %903 = vrot.lane.b32.xlu0 %v797, 127
    %v904 = vpop.permute.xlu0 %903
    %905 = vrot.lane.b32.xlu0 %v798, 127
    %v906 = vpop.permute.xlu0 %905
    %907 = vrot.lane.b32.xlu0 %v799, 127
    %v908 = vpop.permute.xlu0 %907
    %909 = vrot.lane.b32.xlu0 %v800, 127
    %v910 = vpop.permute.xlu0 %909
    %911 = vrot.lane.b32.xlu0 %v801, 127
    %v912 = vpop.permute.xlu0 %911
    %913 = vrot.lane.b32.xlu0 %v802, 127
    %v914 = vpop.permute.xlu0 %913
    %915 = vrot.lane.b32.xlu0 %v803, 127
    %v916 = vpop.permute.xlu0 %915
    %917 = vrot.lane.b32.xlu0 %v804, 127
    %v918 = vpop.permute.xlu0 %917
    %919 = vrot.lane.b32.xlu0 %v805, 127
    %v920 = vpop.permute.xlu0 %919
    %921 = vrot.lane.b32.xlu0 %v806, 127
    %v922 = vpop.permute.xlu0 %921
    %923 = vrot.lane.b32.xlu0 %v807, 127
    %v924 = vpop.permute.xlu0 %923
    %925 = vrot.lane.b32.xlu0 %v808, 127
    %v926 = vpop.permute.xlu0 %925
    %927 = vrot.lane.b32.xlu0 %v809, 127
    %v928 = vpop.permute.xlu0 %927
    %929 = vrot.lane.b32.xlu0 %v810, 127
    %v930 = vpop.permute.xlu0 %929
    %v931 = vadd.f32 %v859, %v884
    %v932 = vadd.f32 %v860, %v886
    %v933 = vadd.f32 %v861, %v888
    %v934 = vadd.f32 %v862, %v890
    %v935 = vadd.f32 %v863, %v892
    %v936 = vadd.f32 %v864, %v894
    %v937 = vadd.f32 %v865, %v896
    %v938 = vadd.f32 %v866, %v898
    %v939 = vadd.f32 %v867, %v900
    %v940 = vadd.f32 %v868, %v902
    %v941 = vadd.f32 %v869, %v904
    %v942 = vadd.f32 %v870, %v906
    %v943 = vadd.f32 %v871, %v908
    %v944 = vadd.f32 %v872, %v910
    %v945 = vadd.f32 %v873, %v912
    %v946 = vadd.f32 %v874, %v914
    %v947 = vadd.f32 %v875, %v916
    %v948 = vadd.f32 %v876, %v918
    %v949 = vadd.f32 %v877, %v920
    %v950 = vadd.f32 %v878, %v922
    %v951 = vadd.f32 %v879, %v924
    %v952 = vadd.f32 %v880, %v926
    %v953 = vadd.f32 %v881, %v928
    %v954 = vadd.f32 %v882, %v930
    %v955 = vadd.f32 %v763, %v787
    %v956 = vadd.f32 %v764, %v788
    %v957 = vadd.f32 %v765, %v789
    %v958 = vadd.f32 %v766, %v790
    %v959 = vadd.f32 %v767, %v791
    %v960 = vadd.f32 %v768, %v792
    %v961 = vadd.f32 %v769, %v793
    %v962 = vadd.f32 %v770, %v794
    %v963 = vadd.f32 %v771, %v795
    %v964 = vadd.f32 %v772, %v796
    %v965 = vadd.f32 %v773, %v797
    %v966 = vadd.f32 %v774, %v798
    %v967 = vadd.f32 %v775, %v799
    %v968 = vadd.f32 %v776, %v800
    %v969 = vadd.f32 %v777, %v801
    %v970 = vadd.f32 %v778, %v802
    %v971 = vadd.f32 %v779, %v803
    %v972 = vadd.f32 %v780, %v804
    %v973 = vadd.f32 %v781, %v805
    %v974 = vadd.f32 %v782, %v806
    %v975 = vadd.f32 %v783, %v807
    %v976 = vadd.f32 %v784, %v808
    %v977 = vadd.f32 %v785, %v809
    %v978 = vadd.f32 %v786, %v810
    %v979 = vmul.f32 %v931, 0.051736023
    %v980 = vmul.f32 %v932, 0.051736023
    %v981 = vmul.f32 %v933, 0.051736023
    %v982 = vmul.f32 %v934, 0.051736023
    %v983 = vmul.f32 %v935, 0.051736023
    %v984 = vmul.f32 %v936, 0.051736023
    %v985 = vmul.f32 %v937, 0.051736023
    %v986 = vmul.f32 %v938, 0.051736023
    %v987 = vmul.f32 %v939, 0.051736023
    %v988 = vmul.f32 %v940, 0.051736023
    %v989 = vmul.f32 %v941, 0.051736023
    %v990 = vmul.f32 %v942, 0.051736023
    %v991 = vmul.f32 %v943, 0.051736023
    %v992 = vmul.f32 %v944, 0.051736023
    %v993 = vmul.f32 %v945, 0.051736023
    %v994 = vmul.f32 %v946, 0.051736023
    %v995 = vmul.f32 %v947, 0.051736023
    %v996 = vmul.f32 %v948, 0.051736023
    %v997 = vmul.f32 %v949, 0.051736023
    %v998 = vmul.f32 %v950, 0.051736023
    %v999 = vmul.f32 %v951, 0.051736023
    %v1000 = vmul.f32 %v952, 0.051736023
    %v1001 = vmul.f32 %v953, 0.051736023
    %v1002 = vmul.f32 %v954, 0.051736023
    %v1003 = vmul.f32 %v955, 0.12794742
    %v1004 = vmul.f32 %v956, 0.12794742
    %v1005 = vmul.f32 %v957, 0.12794742
    %v1006 = vmul.f32 %v958, 0.12794742
    %v1007 = vmul.f32 %v959, 0.12794742
    %v1008 = vmul.f32 %v960, 0.12794742
    %v1009 = vmul.f32 %v961, 0.12794742
    %v1010 = vmul.f32 %v962, 0.12794742
    %v1011 = vmul.f32 %v963, 0.12794742
    %v1012 = vmul.f32 %v964, 0.12794742
    %v1013 = vmul.f32 %v965, 0.12794742
    %v1014 = vmul.f32 %v966, 0.12794742
    %v1015 = vmul.f32 %v967, 0.12794742
    %v1016 = vmul.f32 %v968, 0.12794742
    %v1017 = vmul.f32 %v969, 0.12794742
    %v1018 = vmul.f32 %v970, 0.12794742
    %v1019 = vmul.f32 %v971, 0.12794742
    %v1020 = vmul.f32 %v972, 0.12794742
    %v1021 = vmul.f32 %v973, 0.12794742
    %v1022 = vmul.f32 %v974, 0.12794742
    %v1023 = vmul.f32 %v975, 0.12794742
    %v1024 = vmul.f32 %v976, 0.12794742
    %v1025 = vmul.f32 %v977, 0.12794742
    %v1026 = vmul.f32 %v978, 0.12794742
    %v1027 = vadd.f32 %v979, %v1003
    %v1028 = vadd.f32 %v980, %v1004
    %v1029 = vadd.f32 %v981, %v1005
    %v1030 = vadd.f32 %v982, %v1006
    %v1031 = vadd.f32 %v983, %v1007
    %v1032 = vadd.f32 %v984, %v1008
    %v1033 = vadd.f32 %v985, %v1009
    %v1034 = vadd.f32 %v986, %v1010
    %v1035 = vadd.f32 %v987, %v1011
    %v1036 = vadd.f32 %v988, %v1012
    %v1037 = vadd.f32 %v989, %v1013
    %v1038 = vadd.f32 %v990, %v1014
    %v1039 = vadd.f32 %v991, %v1015
    %v1040 = vadd.f32 %v992, %v1016
    %v1041 = vadd.f32 %v993, %v1017
    %v1042 = vadd.f32 %v994, %v1018
    %v1043 = vadd.f32 %v995, %v1019
    %v1044 = vadd.f32 %v996, %v1020
    %v1045 = vadd.f32 %v997, %v1021
    %v1046 = vadd.f32 %v998, %v1022
    %v1047 = vadd.f32 %v999, %v1023
    %v1048 = vadd.f32 %v1000, %v1024
    %v1049 = vadd.f32 %v1001, %v1025
    %v1050 = vadd.f32 %v1002, %v1026
    %v1051 = vmul.f32 %v619, 0.28126618
    %v1052 = vmul.f32 %v620, 0.28126618
    %v1053 = vmul.f32 %v621, 0.28126618
    %v1054 = vmul.f32 %v622, 0.28126618
    %v1055 = vmul.f32 %v623, 0.28126618
    %v1056 = vmul.f32 %v624, 0.28126618
    %v1057 = vmul.f32 %v625, 0.28126618
    %v1058 = vmul.f32 %v626, 0.28126618
    %v1059 = vmul.f32 %v627, 0.28126618
    %v1060 = vmul.f32 %v628, 0.28126618
    %v1061 = vmul.f32 %v629, 0.28126618
    %v1062 = vmul.f32 %v630, 0.28126618
    %v1063 = vmul.f32 %v631, 0.28126618
    %v1064 = vmul.f32 %v632, 0.28126618
    %v1065 = vmul.f32 %v633, 0.28126618
    %v1066 = vmul.f32 %v634, 0.28126618
    %v1067 = vmul.f32 %v635, 0.28126618
    %v1068 = vmul.f32 %v636, 0.28126618
    %v1069 = vmul.f32 %v637, 0.28126618
    %v1070 = vmul.f32 %v638, 0.28126618
    %v1071 = vmul.f32 %v639, 0.28126618
    %v1072 = vmul.f32 %v640, 0.28126618
    %v1073 = vmul.f32 %v641, 0.28126618
    %v1074 = vmul.f32 %v642, 0.28126618
    %v1075 = vadd.f32 %v1027, %v1051
    %v1076 = vadd.f32 %v1028, %v1052
    %v1077 = vadd.f32 %v1029, %v1053
    %v1078 = vadd.f32 %v1030, %v1054
    %v1079 = vadd.f32 %v1031, %v1055
    %v1080 = vadd.f32 %v1032, %v1056
    %v1081 = vadd.f32 %v1033, %v1057
    %v1082 = vadd.f32 %v1034, %v1058
    %v1083 = vadd.f32 %v1035, %v1059
    %v1084 = vadd.f32 %v1036, %v1060
    %v1085 = vadd.f32 %v1037, %v1061
    %v1086 = vadd.f32 %v1038, %v1062
    %v1087 = vadd.f32 %v1039, %v1063
    %v1088 = vadd.f32 %v1040, %v1064
    %v1089 = vadd.f32 %v1041, %v1065
    %v1090 = vadd.f32 %v1042, %v1066
    %v1091 = vadd.f32 %v1043, %v1067
    %v1092 = vadd.f32 %v1044, %v1068
    %v1093 = vadd.f32 %v1045, %v1069
    %v1094 = vadd.f32 %v1046, %v1070
    %v1095 = vadd.f32 %v1047, %v1071
    %v1096 = vadd.f32 %v1048, %v1072
    %v1097 = vadd.f32 %v1049, %v1073
    %v1098 = vadd.f32 %v1050, %v1074
    %v1100 = vlaneseq
    %v1101 = vshrl.u32 %v1100, 7
    %v1102 = vsub.s32 0, %v1101
    %v1103 = vrot.slane %v474, %v1102
    %v1105 = vmul.f32 %v1075, %v1103
    %v1106 = vmul.f32 %v1076, %v1103
    %v1107 = vmul.f32 %v1077, %v1103
    %v1108 = vmul.f32 %v1078, %v1103
    %v1109 = vmul.f32 %v1079, %v1103
    %v1110 = vmul.f32 %v1080, %v1103
    %v1111 = vmul.f32 %v1081, %v1103
    %v1112 = vmul.f32 %v1082, %v1103
    %v1113 = vmul.f32 %v1083, %v1103
    %v1114 = vmul.f32 %v1084, %v1103
    %v1115 = vmul.f32 %v1085, %v1103
    %v1116 = vmul.f32 %v1086, %v1103
    %v1117 = vmul.f32 %v1087, %v1103
    %v1118 = vmul.f32 %v1088, %v1103
    %v1119 = vmul.f32 %v1089, %v1103
    %v1120 = vmul.f32 %v1090, %v1103
    %v1121 = vmul.f32 %v1091, %v1103
    %v1122 = vmul.f32 %v1092, %v1103
    %v1123 = vmul.f32 %v1093, %v1103
    %v1124 = vmul.f32 %v1094, %v1103
    %v1125 = vmul.f32 %v1095, %v1103
    %v1126 = vmul.f32 %v1096, %v1103
    %v1127 = vmul.f32 %v1097, %v1103
    %v1128 = vmul.f32 %v1098, %v1103
    %1129 = vst [vmem:[#allocation2 + $0x1] sm:$0xff] %v1105
    %1130 = vst [vmem:[#allocation2 + $0x9] sm:$0xff] %v1106
    %1131 = vst [vmem:[#allocation2 + $0x19] sm:$0xff] %v1107
    %1132 = vst [vmem:[#allocation2 + $0x21] sm:$0xff] %v1108
    %1133 = vst [vmem:[#allocation2 + $0x31] sm:$0xff] %v1109
    %1134 = vst [vmem:[#allocation2 + $0x39] sm:$0xff] %v1110
    %1135 = vst [vmem:[#allocation2 + $0x49] sm:$0xff] %v1111
    %1136 = vst [vmem:[#allocation2 + $0x51] sm:$0xff] %v1112
    %1137 = vst [vmem:[#allocation2 + $0x61] sm:$0xff] %v1113
    %1138 = vst [vmem:[#allocation2 + $0x69] sm:$0xff] %v1114
    %1139 = vst [vmem:[#allocation2 + $0x79] sm:$0xff] %v1115
    %1140 = vst [vmem:[#allocation2 + $0x81] sm:$0xff] %v1116
    %1141 = vst [vmem:[#allocation2 + $0x91] sm:$0xff] %v1117
    %1142 = vst [vmem:[#allocation2 + $0x99] sm:$0xff] %v1118
    %1143 = vst [vmem:[#allocation2 + $0xa9] sm:$0xff] %v1119
    %1144 = vst [vmem:[#allocation2 + $0xb1] sm:$0xff] %v1120
    %1145 = vst [vmem:[#allocation2 + $0xc1] sm:$0xff] %v1121
    %1146 = vst [vmem:[#allocation2 + $0xc9] sm:$0xff] %v1122
    %1147 = vst [vmem:[#allocation2 + $0xd9] sm:$0xff] %v1123
    %1148 = vst [vmem:[#allocation2 + $0xe1] sm:$0xff] %v1124
    %1149 = vst [vmem:[#allocation2 + $0xf1] sm:$0xff] %v1125
    %1150 = vst [vmem:[#allocation2 + $0xf9] sm:$0xff] %v1126
    %1151 = vst [vmem:[#allocation2 + $0x109] sm:$0xff] %v1127
    %1152 = vst [vmem:[#allocation2 + $0x111] sm:$0xff] %v1128
    %v1153 = vld [vmem:[#allocation2] sm:$0xff]
    %v1154 = vld [vmem:[#allocation2 + $0x8] sm:$0xff]
    %v1155 = vld [vmem:[#allocation2 + $0x18] sm:$0xff]
    %v1156 = vld [vmem:[#allocation2 + $0x20] sm:$0xff]
    %v1157 = vld [vmem:[#allocation2 + $0x30] sm:$0xff]
    %v1158 = vld [vmem:[#allocation2 + $0x38] sm:$0xff]
    %v1159 = vld [vmem:[#allocation2 + $0x48] sm:$0xff]
    %v1160 = vld [vmem:[#allocation2 + $0x50] sm:$0xff]
    %v1161 = vld [vmem:[#allocation2 + $0x60] sm:$0xff]
    %v1162 = vld [vmem:[#allocation2 + $0x68] sm:$0xff]
    %v1163 = vld [vmem:[#allocation2 + $0x78] sm:$0xff]
    %v1164 = vld [vmem:[#allocation2 + $0x80] sm:$0xff]
    %v1165 = vld [vmem:[#allocation2 + $0x90] sm:$0xff]
    %v1166 = vld [vmem:[#allocation2 + $0x98] sm:$0xff]
    %v1167 = vld [vmem:[#allocation2 + $0xa8] sm:$0xff]
    %v1168 = vld [vmem:[#allocation2 + $0xb0] sm:$0xff]
    %v1169 = vld [vmem:[#allocation2 + $0xc0] sm:$0xff]
    %v1170 = vld [vmem:[#allocation2 + $0xc8] sm:$0xff]
    %v1171 = vld [vmem:[#allocation2 + $0xd8] sm:$0xff]
    %v1172 = vld [vmem:[#allocation2 + $0xe0] sm:$0xff]
    %v1173 = vld [vmem:[#allocation2 + $0xf0] sm:$0xff]
    %v1174 = vld [vmem:[#allocation2 + $0xf8] sm:$0xff]
    %v1175 = vld [vmem:[#allocation2 + $0x108] sm:$0xff]
    %v1176 = vld [vmem:[#allocation2 + $0x110] sm:$0xff]
    %1177 = vrot.lane.b32.xlu0 %v1153, 1
    %v1178 = vpop.permute.xlu0 %1177
    %1179 = vrot.lane.b32.xlu0 %v1154, 1
    %v1180 = vpop.permute.xlu0 %1179
    %1181 = vrot.lane.b32.xlu0 %v1155, 1
    %v1182 = vpop.permute.xlu0 %1181
    %1183 = vrot.lane.b32.xlu0 %v1156, 1
    %v1184 = vpop.permute.xlu0 %1183
    %1185 = vrot.lane.b32.xlu0 %v1157, 1
    %v1186 = vpop.permute.xlu0 %1185
    %1187 = vrot.lane.b32.xlu0 %v1158, 1
    %v1188 = vpop.permute.xlu0 %1187
    %1189 = vrot.lane.b32.xlu0 %v1159, 1
    %v1190 = vpop.permute.xlu0 %1189
    %1191 = vrot.lane.b32.xlu0 %v1160, 1
    %v1192 = vpop.permute.xlu0 %1191
    %1193 = vrot.lane.b32.xlu0 %v1161, 1
    %v1194 = vpop.permute.xlu0 %1193
    %1195 = vrot.lane.b32.xlu0 %v1162, 1
    %v1196 = vpop.permute.xlu0 %1195
    %1197 = vrot.lane.b32.xlu0 %v1163, 1
    %v1198 = vpop.permute.xlu0 %1197
    %1199 = vrot.lane.b32.xlu0 %v1164, 1
    %v1200 = vpop.permute.xlu0 %1199
    %1201 = vrot.lane.b32.xlu0 %v1165, 1
    %v1202 = vpop.permute.xlu0 %1201
    %1203 = vrot.lane.b32.xlu0 %v1166, 1
    %v1204 = vpop.permute.xlu0 %1203
    %1205 = vrot.lane.b32.xlu0 %v1167, 1
    %v1206 = vpop.permute.xlu0 %1205
    %1207 = vrot.lane.b32.xlu0 %v1168, 1
    %v1208 = vpop.permute.xlu0 %1207
    %1209 = vrot.lane.b32.xlu0 %v1169, 1
    %v1210 = vpop.permute.xlu0 %1209
    %1211 = vrot.lane.b32.xlu0 %v1170, 1
    %v1212 = vpop.permute.xlu0 %1211
    %1213 = vrot.lane.b32.xlu0 %v1171, 1
    %v1214 = vpop.permute.xlu0 %1213
    %1215 = vrot.lane.b32.xlu0 %v1172, 1
    %v1216 = vpop.permute.xlu0 %1215
    %1217 = vrot.lane.b32.xlu0 %v1173, 1
    %v1218 = vpop.permute.xlu0 %1217
    %1219 = vrot.lane.b32.xlu0 %v1174, 1
    %v1220 = vpop.permute.xlu0 %1219
    %1221 = vrot.lane.b32.xlu0 %v1175, 1
    %v1222 = vpop.permute.xlu0 %1221
    %1223 = vrot.lane.b32.xlu0 %v1176, 1
    %v1224 = vpop.permute.xlu0 %1223
    %1225 = vrot.lane.b32.xlu0 %v1153, 127
    %v1226 = vpop.permute.xlu0 %1225
    %1227 = vrot.lane.b32.xlu0 %v1154, 127
    %v1228 = vpop.permute.xlu0 %1227
    %1229 = vrot.lane.b32.xlu0 %v1155, 127
    %v1230 = vpop.permute.xlu0 %1229
    %1231 = vrot.lane.b32.xlu0 %v1156, 127
    %v1232 = vpop.permute.xlu0 %1231
    %1233 = vrot.lane.b32.xlu0 %v1157, 127
    %v1234 = vpop.permute.xlu0 %1233
    %1235 = vrot.lane.b32.xlu0 %v1158, 127
    %v1236 = vpop.permute.xlu0 %1235
    %1237 = vrot.lane.b32.xlu0 %v1159, 127
    %v1238 = vpop.permute.xlu0 %1237
    %1239 = vrot.lane.b32.xlu0 %v1160, 127
    %v1240 = vpop.permute.xlu0 %1239
    %1241 = vrot.lane.b32.xlu0 %v1161, 127
    %v1242 = vpop.permute.xlu0 %1241
    %1243 = vrot.lane.b32.xlu0 %v1162, 127
    %v1244 = vpop.permute.xlu0 %1243
    %1245 = vrot.lane.b32.xlu0 %v1163, 127
    %v1246 = vpop.permute.xlu0 %1245
    %1247 = vrot.lane.b32.xlu0 %v1164, 127
    %v1248 = vpop.permute.xlu0 %1247
    %1249 = vrot.lane.b32.xlu0 %v1165, 127
    %v1250 = vpop.permute.xlu0 %1249
    %1251 = vrot.lane.b32.xlu0 %v1166, 127
    %v1252 = vpop.permute.xlu0 %1251
    %1253 = vrot.lane.b32.xlu0 %v1167, 127
    %v1254 = vpop.permute.xlu0 %1253
    %1255 = vrot.lane.b32.xlu0 %v1168, 127
    %v1256 = vpop.permute.xlu0 %1255
    %1257 = vrot.lane.b32.xlu0 %v1169, 127
    %v1258 = vpop.permute.xlu0 %1257
    %1259 = vrot.lane.b32.xlu0 %v1170, 127
    %v1260 = vpop.permute.xlu0 %1259
    %1261 = vrot.lane.b32.xlu0 %v1171, 127
    %v1262 = vpop.permute.xlu0 %1261
    %1263 = vrot.lane.b32.xlu0 %v1172, 127
    %v1264 = vpop.permute.xlu0 %1263
    %1265 = vrot.lane.b32.xlu0 %v1173, 127
    %v1266 = vpop.permute.xlu0 %1265
    %1267 = vrot.lane.b32.xlu0 %v1174, 127
    %v1268 = vpop.permute.xlu0 %1267
    %1269 = vrot.lane.b32.xlu0 %v1175, 127
    %v1270 = vpop.permute.xlu0 %1269
    %1271 = vrot.lane.b32.xlu0 %v1176, 127
    %v1272 = vpop.permute.xlu0 %1271
    %v1273 = vadd.f32 %v1178, %v1226
    %v1274 = vadd.f32 %v1180, %v1228
    %v1275 = vadd.f32 %v1182, %v1230
    %v1276 = vadd.f32 %v1184, %v1232
    %v1277 = vadd.f32 %v1186, %v1234
    %v1278 = vadd.f32 %v1188, %v1236
    %v1279 = vadd.f32 %v1190, %v1238
    %v1280 = vadd.f32 %v1192, %v1240
    %v1281 = vadd.f32 %v1194, %v1242
    %v1282 = vadd.f32 %v1196, %v1244
    %v1283 = vadd.f32 %v1198, %v1246
    %v1284 = vadd.f32 %v1200, %v1248
    %v1285 = vadd.f32 %v1202, %v1250
    %v1286 = vadd.f32 %v1204, %v1252
    %v1287 = vadd.f32 %v1206, %v1254
    %v1288 = vadd.f32 %v1208, %v1256
    %v1289 = vadd.f32 %v1210, %v1258
    %v1290 = vadd.f32 %v1212, %v1260
    %v1291 = vadd.f32 %v1214, %v1262
    %v1292 = vadd.f32 %v1216, %v1264
    %v1293 = vadd.f32 %v1218, %v1266
    %v1294 = vadd.f32 %v1220, %v1268
    %v1295 = vadd.f32 %v1222, %v1270
    %v1296 = vadd.f32 %v1224, %v1272
    %v1297 = vld [vmem:[#allocation2 + $0x1] sm:$0xff]
    %v1298 = vld [vmem:[#allocation2 + $0x9] sm:$0xff]
    %v1299 = vld [vmem:[#allocation2 + $0x19] sm:$0xff]
    %v1300 = vld [vmem:[#allocation2 + $0x21] sm:$0xff]
    %v1301 = vld [vmem:[#allocation2 + $0x31] sm:$0xff]
    %v1302 = vld [vmem:[#allocation2 + $0x39] sm:$0xff]
    %v1303 = vld [vmem:[#allocation2 + $0x49] sm:$0xff]
    %v1304 = vld [vmem:[#allocation2 + $0x51] sm:$0xff]
    %v1305 = vld [vmem:[#allocation2 + $0x61] sm:$0xff]
    %v1306 = vld [vmem:[#allocation2 + $0x69] sm:$0xff]
    %v1307 = vld [vmem:[#allocation2 + $0x79] sm:$0xff]
    %v1308 = vld [vmem:[#allocation2 + $0x81] sm:$0xff]
    %v1309 = vld [vmem:[#allocation2 + $0x91] sm:$0xff]
    %v1310 = vld [vmem:[#allocation2 + $0x99] sm:$0xff]
    %v1311 = vld [vmem:[#allocation2 + $0xa9] sm:$0xff]
    %v1312 = vld [vmem:[#allocation2 + $0xb1] sm:$0xff]
    %v1313 = vld [vmem:[#allocation2 + $0xc1] sm:$0xff]
    %v1314 = vld [vmem:[#allocation2 + $0xc9] sm:$0xff]
    %v1315 = vld [vmem:[#allocation2 + $0xd9] sm:$0xff]
    %v1316 = vld [vmem:[#allocation2 + $0xe1] sm:$0xff]
    %v1317 = vld [vmem:[#allocation2 + $0xf1] sm:$0xff]
    %v1318 = vld [vmem:[#allocation2 + $0xf9] sm:$0xff]
    %v1319 = vld [vmem:[#allocation2 + $0x109] sm:$0xff]
    %v1320 = vld [vmem:[#allocation2 + $0x111] sm:$0xff]
    %1321 = vrot.lane.b32.xlu0 %v1297, 1
    %v1322 = vpop.permute.xlu0 %1321
    %1323 = vrot.lane.b32.xlu0 %v1298, 1
    %v1324 = vpop.permute.xlu0 %1323
    %1325 = vrot.lane.b32.xlu0 %v1299, 1
    %v1326 = vpop.permute.xlu0 %1325
    %1327 = vrot.lane.b32.xlu0 %v1300, 1
    %v1328 = vpop.permute.xlu0 %1327
    %1329 = vrot.lane.b32.xlu0 %v1301, 1
    %v1330 = vpop.permute.xlu0 %1329
    %1331 = vrot.lane.b32.xlu0 %v1302, 1
    %v1332 = vpop.permute.xlu0 %1331
    %1333 = vrot.lane.b32.xlu0 %v1303, 1
    %v1334 = vpop.permute.xlu0 %1333
    %1335 = vrot.lane.b32.xlu0 %v1304, 1
    %v1336 = vpop.permute.xlu0 %1335
    %1337 = vrot.lane.b32.xlu0 %v1305, 1
    %v1338 = vpop.permute.xlu0 %1337
    %1339 = vrot.lane.b32.xlu0 %v1306, 1
    %v1340 = vpop.permute.xlu0 %1339
    %1341 = vrot.lane.b32.xlu0 %v1307, 1
    %v1342 = vpop.permute.xlu0 %1341
    %1343 = vrot.lane.b32.xlu0 %v1308, 1
    %v1344 = vpop.permute.xlu0 %1343
    %1345 = vrot.lane.b32.xlu0 %v1309, 1
    %v1346 = vpop.permute.xlu0 %1345
    %1347 = vrot.lane.b32.xlu0 %v1310, 1
    %v1348 = vpop.permute.xlu0 %1347
    %1349 = vrot.lane.b32.xlu0 %v1311, 1
    %v1350 = vpop.permute.xlu0 %1349
    %1351 = vrot.lane.b32.xlu0 %v1312, 1
    %v1352 = vpop.permute.xlu0 %1351
    %1353 = vrot.lane.b32.xlu0 %v1313, 1
    %v1354 = vpop.permute.xlu0 %1353
    %1355 = vrot.lane.b32.xlu0 %v1314, 1
    %v1356 = vpop.permute.xlu0 %1355
    %1357 = vrot.lane.b32.xlu0 %v1315, 1
    %v1358 = vpop.permute.xlu0 %1357
    %1359 = vrot.lane.b32.xlu0 %v1316, 1
    %v1360 = vpop.permute.xlu0 %1359
    %1361 = vrot.lane.b32.xlu0 %v1317, 1
    %v1362 = vpop.permute.xlu0 %1361
    %1363 = vrot.lane.b32.xlu0 %v1318, 1
    %v1364 = vpop.permute.xlu0 %1363
    %1365 = vrot.lane.b32.xlu0 %v1319, 1
    %v1366 = vpop.permute.xlu0 %1365
    %1367 = vrot.lane.b32.xlu0 %v1320, 1
    %v1368 = vpop.permute.xlu0 %1367
    %v1369 = vadd.f32 %v1153, %v1322
    %v1370 = vadd.f32 %v1154, %v1324
    %v1371 = vadd.f32 %v1155, %v1326
    %v1372 = vadd.f32 %v1156, %v1328
    %v1373 = vadd.f32 %v1157, %v1330
    %v1374 = vadd.f32 %v1158, %v1332
    %v1375 = vadd.f32 %v1159, %v1334
    %v1376 = vadd.f32 %v1160, %v1336
    %v1377 = vadd.f32 %v1161, %v1338
    %v1378 = vadd.f32 %v1162, %v1340
    %v1379 = vadd.f32 %v1163, %v1342
    %v1380 = vadd.f32 %v1164, %v1344
    %v1381 = vadd.f32 %v1165, %v1346
    %v1382 = vadd.f32 %v1166, %v1348
    %v1383 = vadd.f32 %v1167, %v1350
    %v1384 = vadd.f32 %v1168, %v1352
    %v1385 = vadd.f32 %v1169, %v1354
    %v1386 = vadd.f32 %v1170, %v1356
    %v1387 = vadd.f32 %v1171, %v1358
    %v1388 = vadd.f32 %v1172, %v1360
    %v1389 = vadd.f32 %v1173, %v1362
    %v1390 = vadd.f32 %v1174, %v1364
    %v1391 = vadd.f32 %v1175, %v1366
    %v1392 = vadd.f32 %v1176, %v1368
    %1393 = vrot.lane.b32.xlu0 %v1297, 127
    %v1394 = vpop.permute.xlu0 %1393
    %1395 = vrot.lane.b32.xlu0 %v1298, 127
    %v1396 = vpop.permute.xlu0 %1395
    %1397 = vrot.lane.b32.xlu0 %v1299, 127
    %v1398 = vpop.permute.xlu0 %1397
    %1399 = vrot.lane.b32.xlu0 %v1300, 127
    %v1400 = vpop.permute.xlu0 %1399
    %1401 = vrot.lane.b32.xlu0 %v1301, 127
    %v1402 = vpop.permute.xlu0 %1401
    %1403 = vrot.lane.b32.xlu0 %v1302, 127
    %v1404 = vpop.permute.xlu0 %1403
    %1405 = vrot.lane.b32.xlu0 %v1303, 127
    %v1406 = vpop.permute.xlu0 %1405
    %1407 = vrot.lane.b32.xlu0 %v1304, 127
    %v1408 = vpop.permute.xlu0 %1407
    %1409 = vrot.lane.b32.xlu0 %v1305, 127
    %v1410 = vpop.permute.xlu0 %1409
    %1411 = vrot.lane.b32.xlu0 %v1306, 127
    %v1412 = vpop.permute.xlu0 %1411
    %1413 = vrot.lane.b32.xlu0 %v1307, 127
    %v1414 = vpop.permute.xlu0 %1413
    %1415 = vrot.lane.b32.xlu0 %v1308, 127
    %v1416 = vpop.permute.xlu0 %1415
    %1417 = vrot.lane.b32.xlu0 %v1309, 127
    %v1418 = vpop.permute.xlu0 %1417
    %1419 = vrot.lane.b32.xlu0 %v1310, 127
    %v1420 = vpop.permute.xlu0 %1419
    %1421 = vrot.lane.b32.xlu0 %v1311, 127
    %v1422 = vpop.permute.xlu0 %1421
    %1423 = vrot.lane.b32.xlu0 %v1312, 127
    %v1424 = vpop.permute.xlu0 %1423
    %1425 = vrot.lane.b32.xlu0 %v1313, 127
    %v1426 = vpop.permute.xlu0 %1425
    %1427 = vrot.lane.b32.xlu0 %v1314, 127
    %v1428 = vpop.permute.xlu0 %1427
    %1429 = vrot.lane.b32.xlu0 %v1315, 127
    %v1430 = vpop.permute.xlu0 %1429
    %1431 = vrot.lane.b32.xlu0 %v1316, 127
    %v1432 = vpop.permute.xlu0 %1431
    %1433 = vrot.lane.b32.xlu0 %v1317, 127
    %v1434 = vpop.permute.xlu0 %1433
    %1435 = vrot.lane.b32.xlu0 %v1318, 127
    %v1436 = vpop.permute.xlu0 %1435
    %1437 = vrot.lane.b32.xlu0 %v1319, 127
    %v1438 = vpop.permute.xlu0 %1437
    %1439 = vrot.lane.b32.xlu0 %v1320, 127
    %v1440 = vpop.permute.xlu0 %1439
    %v1441 = vadd.f32 %v1369, %v1394
    %v1442 = vadd.f32 %v1370, %v1396
    %v1443 = vadd.f32 %v1371, %v1398
    %v1444 = vadd.f32 %v1372, %v1400
    %v1445 = vadd.f32 %v1373, %v1402
    %v1446 = vadd.f32 %v1374, %v1404
    %v1447 = vadd.f32 %v1375, %v1406
    %v1448 = vadd.f32 %v1376, %v1408
    %v1449 = vadd.f32 %v1377, %v1410
    %v1450 = vadd.f32 %v1378, %v1412
    %v1451 = vadd.f32 %v1379, %v1414
    %v1452 = vadd.f32 %v1380, %v1416
    %v1453 = vadd.f32 %v1381, %v1418
    %v1454 = vadd.f32 %v1382, %v1420
    %v1455 = vadd.f32 %v1383, %v1422
    %v1456 = vadd.f32 %v1384, %v1424
    %v1457 = vadd.f32 %v1385, %v1426
    %v1458 = vadd.f32 %v1386, %v1428
    %v1459 = vadd.f32 %v1387, %v1430
    %v1460 = vadd.f32 %v1388, %v1432
    %v1461 = vadd.f32 %v1389, %v1434
    %v1462 = vadd.f32 %v1390, %v1436
    %v1463 = vadd.f32 %v1391, %v1438
    %v1464 = vadd.f32 %v1392, %v1440
    %v1465 = vld [vmem:[#allocation2 + $0x2] sm:$0xff]
    %v1466 = vld [vmem:[#allocation2 + $0xa] sm:$0xff]
    %v1467 = vld [vmem:[#allocation2 + $0x1a] sm:$0xff]
    %v1468 = vld [vmem:[#allocation2 + $0x22] sm:$0xff]
    %v1469 = vld [vmem:[#allocation2 + $0x32] sm:$0xff]
    %v1470 = vld [vmem:[#allocation2 + $0x3a] sm:$0xff]
    %v1471 = vld [vmem:[#allocation2 + $0x4a] sm:$0xff]
    %v1472 = vld [vmem:[#allocation2 + $0x52] sm:$0xff]
    %v1473 = vld [vmem:[#allocation2 + $0x62] sm:$0xff]
    %v1474 = vld [vmem:[#allocation2 + $0x6a] sm:$0xff]
    %v1475 = vld [vmem:[#allocation2 + $0x7a] sm:$0xff]
    %v1476 = vld [vmem:[#allocation2 + $0x82] sm:$0xff]
    %v1477 = vld [vmem:[#allocation2 + $0x92] sm:$0xff]
    %v1478 = vld [vmem:[#allocation2 + $0x9a] sm:$0xff]
    %v1479 = vld [vmem:[#allocation2 + $0xaa] sm:$0xff]
    %v1480 = vld [vmem:[#allocation2 + $0xb2] sm:$0xff]
    %v1481 = vld [vmem:[#allocation2 + $0xc2] sm:$0xff]
    %v1482 = vld [vmem:[#allocation2 + $0xca] sm:$0xff]
    %v1483 = vld [vmem:[#allocation2 + $0xda] sm:$0xff]
    %v1484 = vld [vmem:[#allocation2 + $0xe2] sm:$0xff]
    %v1485 = vld [vmem:[#allocation2 + $0xf2] sm:$0xff]
    %v1486 = vld [vmem:[#allocation2 + $0xfa] sm:$0xff]
    %v1487 = vld [vmem:[#allocation2 + $0x10a] sm:$0xff]
    %v1488 = vld [vmem:[#allocation2 + $0x112] sm:$0xff]
    %1489 = vrot.lane.b32.xlu0 %v1465, 1
    %v1490 = vpop.permute.xlu0 %1489
    %1491 = vrot.lane.b32.xlu0 %v1466, 1
    %v1492 = vpop.permute.xlu0 %1491
    %1493 = vrot.lane.b32.xlu0 %v1467, 1
    %v1494 = vpop.permute.xlu0 %1493
    %1495 = vrot.lane.b32.xlu0 %v1468, 1
    %v1496 = vpop.permute.xlu0 %1495
    %1497 = vrot.lane.b32.xlu0 %v1469, 1
    %v1498 = vpop.permute.xlu0 %1497
    %1499 = vrot.lane.b32.xlu0 %v1470, 1
    %v1500 = vpop.permute.xlu0 %1499
    %1501 = vrot.lane.b32.xlu0 %v1471, 1
    %v1502 = vpop.permute.xlu0 %1501
    %1503 = vrot.lane.b32.xlu0 %v1472, 1
    %v1504 = vpop.permute.xlu0 %1503
    %1505 = vrot.lane.b32.xlu0 %v1473, 1
    %v1506 = vpop.permute.xlu0 %1505
    %1507 = vrot.lane.b32.xlu0 %v1474, 1
    %v1508 = vpop.permute.xlu0 %1507
    %1509 = vrot.lane.b32.xlu0 %v1475, 1
    %v1510 = vpop.permute.xlu0 %1509
    %1511 = vrot.lane.b32.xlu0 %v1476, 1
    %v1512 = vpop.permute.xlu0 %1511
    %1513 = vrot.lane.b32.xlu0 %v1477, 1
    %v1514 = vpop.permute.xlu0 %1513
    %1515 = vrot.lane.b32.xlu0 %v1478, 1
    %v1516 = vpop.permute.xlu0 %1515
    %1517 = vrot.lane.b32.xlu0 %v1479, 1
    %v1518 = vpop.permute.xlu0 %1517
    %1519 = vrot.lane.b32.xlu0 %v1480, 1
    %v1520 = vpop.permute.xlu0 %1519
    %1521 = vrot.lane.b32.xlu0 %v1481, 1
    %v1522 = vpop.permute.xlu0 %1521
    %1523 = vrot.lane.b32.xlu0 %v1482, 1
    %v1524 = vpop.permute.xlu0 %1523
    %1525 = vrot.lane.b32.xlu0 %v1483, 1
    %v1526 = vpop.permute.xlu0 %1525
    %1527 = vrot.lane.b32.xlu0 %v1484, 1
    %v1528 = vpop.permute.xlu0 %1527
    %1529 = vrot.lane.b32.xlu0 %v1485, 1
    %v1530 = vpop.permute.xlu0 %1529
    %1531 = vrot.lane.b32.xlu0 %v1486, 1
    %v1532 = vpop.permute.xlu0 %1531
    %1533 = vrot.lane.b32.xlu0 %v1487, 1
    %v1534 = vpop.permute.xlu0 %1533
    %1535 = vrot.lane.b32.xlu0 %v1488, 1
    %v1536 = vpop.permute.xlu0 %1535
    %v1537 = vadd.f32 %v1273, %v1490
    %v1538 = vadd.f32 %v1274, %v1492
    %v1539 = vadd.f32 %v1275, %v1494
    %v1540 = vadd.f32 %v1276, %v1496
    %v1541 = vadd.f32 %v1277, %v1498
    %v1542 = vadd.f32 %v1278, %v1500
    %v1543 = vadd.f32 %v1279, %v1502
    %v1544 = vadd.f32 %v1280, %v1504
    %v1545 = vadd.f32 %v1281, %v1506
    %v1546 = vadd.f32 %v1282, %v1508
    %v1547 = vadd.f32 %v1283, %v1510
    %v1548 = vadd.f32 %v1284, %v1512
    %v1549 = vadd.f32 %v1285, %v1514
    %v1550 = vadd.f32 %v1286, %v1516
    %v1551 = vadd.f32 %v1287, %v1518
    %v1552 = vadd.f32 %v1288, %v1520
    %v1553 = vadd.f32 %v1289, %v1522
    %v1554 = vadd.f32 %v1290, %v1524
    %v1555 = vadd.f32 %v1291, %v1526
    %v1556 = vadd.f32 %v1292, %v1528
    %v1557 = vadd.f32 %v1293, %v1530
    %v1558 = vadd.f32 %v1294, %v1532
    %v1559 = vadd.f32 %v1295, %v1534
    %v1560 = vadd.f32 %v1296, %v1536
    %1561 = vrot.lane.b32.xlu0 %v1465, 127
    %v1562 = vpop.permute.xlu0 %1561
    %1563 = vrot.lane.b32.xlu0 %v1466, 127
    %v1564 = vpop.permute.xlu0 %1563
    %1565 = vrot.lane.b32.xlu0 %v1467, 127
    %v1566 = vpop.permute.xlu0 %1565
    %1567 = vrot.lane.b32.xlu0 %v1468, 127
    %v1568 = vpop.permute.xlu0 %1567
    %1569 = vrot.lane.b32.xlu0 %v1469, 127
    %v1570 = vpop.permute.xlu0 %1569
    %1571 = vrot.lane.b32.xlu0 %v1470, 127
    %v1572 = vpop.permute.xlu0 %1571
    %1573 = vrot.lane.b32.xlu0 %v1471, 127
    %v1574 = vpop.permute.xlu0 %1573
    %1575 = vrot.lane.b32.xlu0 %v1472, 127
    %v1576 = vpop.permute.xlu0 %1575
    %1577 = vrot.lane.b32.xlu0 %v1473, 127
    %v1578 = vpop.permute.xlu0 %1577
    %1579 = vrot.lane.b32.xlu0 %v1474, 127
    %v1580 = vpop.permute.xlu0 %1579
    %1581 = vrot.lane.b32.xlu0 %v1475, 127
    %v1582 = vpop.permute.xlu0 %1581
    %1583 = vrot.lane.b32.xlu0 %v1476, 127
    %v1584 = vpop.permute.xlu0 %1583
    %1585 = vrot.lane.b32.xlu0 %v1477, 127
    %v1586 = vpop.permute.xlu0 %1585
    %1587 = vrot.lane.b32.xlu0 %v1478, 127
    %v1588 = vpop.permute.xlu0 %1587
    %1589 = vrot.lane.b32.xlu0 %v1479, 127
    %v1590 = vpop.permute.xlu0 %1589
    %1591 = vrot.lane.b32.xlu0 %v1480, 127
    %v1592 = vpop.permute.xlu0 %1591
    %1593 = vrot.lane.b32.xlu0 %v1481, 127
    %v1594 = vpop.permute.xlu0 %1593
    %1595 = vrot.lane.b32.xlu0 %v1482, 127
    %v1596 = vpop.permute.xlu0 %1595
    %1597 = vrot.lane.b32.xlu0 %v1483, 127
    %v1598 = vpop.permute.xlu0 %1597
    %1599 = vrot.lane.b32.xlu0 %v1484, 127
    %v1600 = vpop.permute.xlu0 %1599
    %1601 = vrot.lane.b32.xlu0 %v1485, 127
    %v1602 = vpop.permute.xlu0 %1601
    %1603 = vrot.lane.b32.xlu0 %v1486, 127
    %v1604 = vpop.permute.xlu0 %1603
    %1605 = vrot.lane.b32.xlu0 %v1487, 127
    %v1606 = vpop.permute.xlu0 %1605
    %1607 = vrot.lane.b32.xlu0 %v1488, 127
    %v1608 = vpop.permute.xlu0 %1607
    %v1609 = vadd.f32 %v1537, %v1562
    %v1610 = vadd.f32 %v1538, %v1564
    %v1611 = vadd.f32 %v1539, %v1566
    %v1612 = vadd.f32 %v1540, %v1568
    %v1613 = vadd.f32 %v1541, %v1570
    %v1614 = vadd.f32 %v1542, %v1572
    %v1615 = vadd.f32 %v1543, %v1574
    %v1616 = vadd.f32 %v1544, %v1576
    %v1617 = vadd.f32 %v1545, %v1578
    %v1618 = vadd.f32 %v1546, %v1580
    %v1619 = vadd.f32 %v1547, %v1582
    %v1620 = vadd.f32 %v1548, %v1584
    %v1621 = vadd.f32 %v1549, %v1586
    %v1622 = vadd.f32 %v1550, %v1588
    %v1623 = vadd.f32 %v1551, %v1590
    %v1624 = vadd.f32 %v1552, %v1592
    %v1625 = vadd.f32 %v1553, %v1594
    %v1626 = vadd.f32 %v1554, %v1596
    %v1627 = vadd.f32 %v1555, %v1598
    %v1628 = vadd.f32 %v1556, %v1600
    %v1629 = vadd.f32 %v1557, %v1602
    %v1630 = vadd.f32 %v1558, %v1604
    %v1631 = vadd.f32 %v1559, %v1606
    %v1632 = vadd.f32 %v1560, %v1608
    %v1633 = vadd.f32 %v1441, %v1465
    %v1634 = vadd.f32 %v1442, %v1466
    %v1635 = vadd.f32 %v1443, %v1467
    %v1636 = vadd.f32 %v1444, %v1468
    %v1637 = vadd.f32 %v1445, %v1469
    %v1638 = vadd.f32 %v1446, %v1470
    %v1639 = vadd.f32 %v1447, %v1471
    %v1640 = vadd.f32 %v1448, %v1472
    %v1641 = vadd.f32 %v1449, %v1473
    %v1642 = vadd.f32 %v1450, %v1474
    %v1643 = vadd.f32 %v1451, %v1475
    %v1644 = vadd.f32 %v1452, %v1476
    %v1645 = vadd.f32 %v1453, %v1477
    %v1646 = vadd.f32 %v1454, %v1478
    %v1647 = vadd.f32 %v1455, %v1479
    %v1648 = vadd.f32 %v1456, %v1480
    %v1649 = vadd.f32 %v1457, %v1481
    %v1650 = vadd.f32 %v1458, %v1482
    %v1651 = vadd.f32 %v1459, %v1483
    %v1652 = vadd.f32 %v1460, %v1484
    %v1653 = vadd.f32 %v1461, %v1485
    %v1654 = vadd.f32 %v1462, %v1486
    %v1655 = vadd.f32 %v1463, %v1487
    %v1656 = vadd.f32 %v1464, %v1488
    %v1657 = vmul.f32 %v1609, 0.051736023
    %v1658 = vmul.f32 %v1610, 0.051736023
    %v1659 = vmul.f32 %v1611, 0.051736023
    %v1660 = vmul.f32 %v1612, 0.051736023
    %v1661 = vmul.f32 %v1613, 0.051736023
    %v1662 = vmul.f32 %v1614, 0.051736023
    %v1663 = vmul.f32 %v1615, 0.051736023
    %v1664 = vmul.f32 %v1616, 0.051736023
    %v1665 = vmul.f32 %v1617, 0.051736023
    %v1666 = vmul.f32 %v1618, 0.051736023
    %v1667 = vmul.f32 %v1619, 0.051736023
    %v1668 = vmul.f32 %v1620, 0.051736023
    %v1669 = vmul.f32 %v1621, 0.051736023
    %v1670 = vmul.f32 %v1622, 0.051736023
    %v1671 = vmul.f32 %v1623, 0.051736023
    %v1672 = vmul.f32 %v1624, 0.051736023
    %v1673 = vmul.f32 %v1625, 0.051736023
    %v1674 = vmul.f32 %v1626, 0.051736023
    %v1675 = vmul.f32 %v1627, 0.051736023
    %v1676 = vmul.f32 %v1628, 0.051736023
    %v1677 = vmul.f32 %v1629, 0.051736023
    %v1678 = vmul.f32 %v1630, 0.051736023
    %v1679 = vmul.f32 %v1631, 0.051736023
    %v1680 = vmul.f32 %v1632, 0.051736023
    %v1681 = vmul.f32 %v1633, 0.12794742
    %v1682 = vmul.f32 %v1634, 0.12794742
    %v1683 = vmul.f32 %v1635, 0.12794742
    %v1684 = vmul.f32 %v1636, 0.12794742
    %v1685 = vmul.f32 %v1637, 0.12794742
    %v1686 = vmul.f32 %v1638, 0.12794742
    %v1687 = vmul.f32 %v1639, 0.12794742
    %v1688 = vmul.f32 %v1640, 0.12794742
    %v1689 = vmul.f32 %v1641, 0.12794742
    %v1690 = vmul.f32 %v1642, 0.12794742
    %v1691 = vmul.f32 %v1643, 0.12794742
    %v1692 = vmul.f32 %v1644, 0.12794742
    %v1693 = vmul.f32 %v1645, 0.12794742
    %v1694 = vmul.f32 %v1646, 0.12794742
    %v1695 = vmul.f32 %v1647, 0.12794742
    %v1696 = vmul.f32 %v1648, 0.12794742
    %v1697 = vmul.f32 %v1649, 0.12794742
    %v1698 = vmul.f32 %v1650, 0.12794742
    %v1699 = vmul.f32 %v1651, 0.12794742
    %v1700 = vmul.f32 %v1652, 0.12794742
    %v1701 = vmul.f32 %v1653, 0.12794742
    %v1702 = vmul.f32 %v1654, 0.12794742
    %v1703 = vmul.f32 %v1655, 0.12794742
    %v1704 = vmul.f32 %v1656, 0.12794742
    %v1705 = vadd.f32 %v1657, %v1681
    %v1706 = vadd.f32 %v1658, %v1682
    %v1707 = vadd.f32 %v1659, %v1683
    %v1708 = vadd.f32 %v1660, %v1684
    %v1709 = vadd.f32 %v1661, %v1685
    %v1710 = vadd.f32 %v1662, %v1686
    %v1711 = vadd.f32 %v1663, %v1687
    %v1712 = vadd.f32 %v1664, %v1688
    %v1713 = vadd.f32 %v1665, %v1689
    %v1714 = vadd.f32 %v1666, %v1690
    %v1715 = vadd.f32 %v1667, %v1691
    %v1716 = vadd.f32 %v1668, %v1692
    %v1717 = vadd.f32 %v1669, %v1693
    %v1718 = vadd.f32 %v1670, %v1694
    %v1719 = vadd.f32 %v1671, %v1695
    %v1720 = vadd.f32 %v1672, %v1696
    %v1721 = vadd.f32 %v1673, %v1697
    %v1722 = vadd.f32 %v1674, %v1698
    %v1723 = vadd.f32 %v1675, %v1699
    %v1724 = vadd.f32 %v1676, %v1700
    %v1725 = vadd.f32 %v1677, %v1701
    %v1726 = vadd.f32 %v1678, %v1702
    %v1727 = vadd.f32 %v1679, %v1703
    %v1728 = vadd.f32 %v1680, %v1704
    %v1729 = vmul.f32 %v1297, 0.28126618
    %v1730 = vmul.f32 %v1298, 0.28126618
    %v1731 = vmul.f32 %v1299, 0.28126618
    %v1732 = vmul.f32 %v1300, 0.28126618
    %v1733 = vmul.f32 %v1301, 0.28126618
    %v1734 = vmul.f32 %v1302, 0.28126618
    %v1735 = vmul.f32 %v1303, 0.28126618
    %v1736 = vmul.f32 %v1304, 0.28126618
    %v1737 = vmul.f32 %v1305, 0.28126618
    %v1738 = vmul.f32 %v1306, 0.28126618
    %v1739 = vmul.f32 %v1307, 0.28126618
    %v1740 = vmul.f32 %v1308, 0.28126618
    %v1741 = vmul.f32 %v1309, 0.28126618
    %v1742 = vmul.f32 %v1310, 0.28126618
    %v1743 = vmul.f32 %v1311, 0.28126618
    %v1744 = vmul.f32 %v1312, 0.28126618
    %v1745 = vmul.f32 %v1313, 0.28126618
    %v1746 = vmul.f32 %v1314, 0.28126618
    %v1747 = vmul.f32 %v1315, 0.28126618
    %v1748 = vmul.f32 %v1316, 0.28126618
    %v1749 = vmul.f32 %v1317, 0.28126618
    %v1750 = vmul.f32 %v1318, 0.28126618
    %v1751 = vmul.f32 %v1319, 0.28126618
    %v1752 = vmul.f32 %v1320, 0.28126618
    %v1753 = vadd.f32 %v1705, %v1729
    %v1754 = vadd.f32 %v1706, %v1730
    %v1755 = vadd.f32 %v1707, %v1731
    %v1756 = vadd.f32 %v1708, %v1732
    %v1757 = vadd.f32 %v1709, %v1733
    %v1758 = vadd.f32 %v1710, %v1734
    %v1759 = vadd.f32 %v1711, %v1735
    %v1760 = vadd.f32 %v1712, %v1736
    %v1761 = vadd.f32 %v1713, %v1737
    %v1762 = vadd.f32 %v1714, %v1738
    %v1763 = vadd.f32 %v1715, %v1739
    %v1764 = vadd.f32 %v1716, %v1740
    %v1765 = vadd.f32 %v1717, %v1741
    %v1766 = vadd.f32 %v1718, %v1742
    %v1767 = vadd.f32 %v1719, %v1743
    %v1768 = vadd.f32 %v1720, %v1744
    %v1769 = vadd.f32 %v1721, %v1745
    %v1770 = vadd.f32 %v1722, %v1746
    %v1771 = vadd.f32 %v1723, %v1747
    %v1772 = vadd.f32 %v1724, %v1748
    %v1773 = vadd.f32 %v1725, %v1749
    %v1774 = vadd.f32 %v1726, %v1750
    %v1775 = vadd.f32 %v1727, %v1751
    %v1776 = vadd.f32 %v1728, %v1752
    %v1777 = vadd.f32 %v1753, 0.5
    %v1778 = vadd.f32 %v1754, 0.5
    %v1779 = vadd.f32 %v1755, 0.5
    %v1780 = vadd.f32 %v1756, 0.5
    %v1781 = vadd.f32 %v1757, 0.5
    %v1782 = vadd.f32 %v1758, 0.5
    %v1783 = vadd.f32 %v1759, 0.5
    %v1784 = vadd.f32 %v1760, 0.5
    %v1785 = vadd.f32 %v1761, 0.5
    %v1786 = vadd.f32 %v1762, 0.5
    %v1787 = vadd.f32 %v1763, 0.5
    %v1788 = vadd.f32 %v1764, 0.5
    %v1789 = vadd.f32 %v1765, 0.5
    %v1790 = vadd.f32 %v1766, 0.5
    %v1791 = vadd.f32 %v1767, 0.5
    %v1792 = vadd.f32 %v1768, 0.5
    %v1793 = vadd.f32 %v1769, 0.5
    %v1794 = vadd.f32 %v1770, 0.5
    %v1795 = vadd.f32 %v1771, 0.5
    %v1796 = vadd.f32 %v1772, 0.5
    %v1797 = vadd.f32 %v1773, 0.5
    %v1798 = vadd.f32 %v1774, 0.5
    %v1799 = vadd.f32 %v1775, 0.5
    %v1800 = vadd.f32 %v1776, 0.5
    %1801 = vst [vmem:[#allocation8] sm:$0xff] %v1777
    %1802 = vst [vmem:[#allocation8 + $0x8] sm:$0xff] %v1778
    %1803 = vst [vmem:[#allocation8 + $0x10] sm:$0xff] %v1779
    %1804 = vst [vmem:[#allocation8 + $0x18] sm:$0xff] %v1780
    %1805 = vst [vmem:[#allocation8 + $0x20] sm:$0xff] %v1781
    %1806 = vst [vmem:[#allocation8 + $0x28] sm:$0xff] %v1782
    %1807 = vst [vmem:[#allocation8 + $0x30] sm:$0xff] %v1783
    %1808 = vst [vmem:[#allocation8 + $0x38] sm:$0xff] %v1784
    %1809 = vst [vmem:[#allocation8 + $0x40] sm:$0xff] %v1785
    %1810 = vst [vmem:[#allocation8 + $0x48] sm:$0xff] %v1786
    %1811 = vst [vmem:[#allocation8 + $0x50] sm:$0xff] %v1787
    %1812 = vst [vmem:[#allocation8 + $0x58] sm:$0xff] %v1788
    %1813 = vst [vmem:[#allocation8 + $0x60] sm:$0xff] %v1789
    %1814 = vst [vmem:[#allocation8 + $0x68] sm:$0xff] %v1790
    %1815 = vst [vmem:[#allocation8 + $0x70] sm:$0xff] %v1791
    %1816 = vst [vmem:[#allocation8 + $0x78] sm:$0xff] %v1792
    %1817 = vst [vmem:[#allocation8 + $0x80] sm:$0xff] %v1793
    %1818 = vst [vmem:[#allocation8 + $0x88] sm:$0xff] %v1794
    %1819 = vst [vmem:[#allocation8 + $0x90] sm:$0xff] %v1795
    %1820 = vst [vmem:[#allocation8 + $0x98] sm:$0xff] %v1796
    %1821 = vst [vmem:[#allocation8 + $0xa0] sm:$0xff] %v1797
    %1822 = vst [vmem:[#allocation8 + $0xa8] sm:$0xff] %v1798
    %1823 = vst [vmem:[#allocation8 + $0xb0] sm:$0xff] %v1799
    %1824 = vst [vmem:[#allocation8 + $0xb8] sm:$0xff] %v1800
    // Predicated region
    $region18: #{_lambda_.1} parent=1 // pred_check
      _
    $region19: #{_lambda_.1} parent=1 // pred_check_branch
      %1826 = sbr.rel (0) target = $region21
    $region20: #{_lambda_.1} parent=1 // pred_region
      %s1828 = ssub.s32 3072, 3072
      %1829 = vsyncadd [#allocation5], %s1828
      %s1830 = sshll.u32 [#allocation8], 4
      %s1831 = int_to_ptr.vmem [resolvable:$true] %s1830
      %1836 = dma.vmem_to_hbm [thread:$0]  %s1831, 3072, %s2, [#allocation5], 128, 128, 8
    $region21: #{_lambda_.1} parent=1 // pred_fallthru
      _
    // Predicated region
    $region22: #{_lambda_.1} parent=1 // pred_check
      _
    $region23: #{_lambda_.1} parent=1 // pred_check_branch
      %1838 = sbr.rel (0) target = $region25
    $region24: #{_lambda_.1} parent=1 // pred_region
      %1839 = dma.done [#allocation5], 3072
    $region25: #{_lambda_.1} parent=1 // pred_fallthru
      _
    %1840 = vsyncpa [#allocation4], 1
    %1841 = vsyncpa [#allocation7], 1
    %1842 = vsyncpa [#allocation5], 1

</llo_original>
